<compile_context>
chip_gen: v7x
topology: tpu7x:2x2x1
jax: 0.10.0
libtpu: 0.0.40
codegen_flags: <defaults>
</compile_context>

<pallas_src>
import functools
import math

import jax
import jax.numpy as jnp
import numpy as np
from jax.experimental import pallas as pl
from jax.experimental.pallas import tpu as pltpu


# ----------------------------------------------------------------------------
# Static (trace-time) construction of the separable blur operators.
# ----------------------------------------------------------------------------
def _gauss_1d(size: int, sigma: float) -> np.ndarray:
    """1-D factor g such that outer(g, g) == gauss_kernel(size, sigma) exactly."""
    interval = (2.0 * sigma + 1.0) / size
    xs = np.linspace(-sigma - interval / 2.0, sigma + interval / 2.0, size + 1)
    cdf = np.array([0.5 * (1.0 + math.erf(v / math.sqrt(2.0))) for v in xs],
                   dtype=np.float64)
    ker1d = np.diff(cdf)                      # >= 0, since cdf is increasing
    s = np.sqrt(ker1d)
    return s / s.sum()                        # float64; outer(g,g) == normalized kernel


def _reflect_blur_matrix(n: int, g: np.ndarray, pad: int) -> np.ndarray:
    """(n, n) matrix B with (B @ x) == 1-D conv of reflection-padded x with taps g."""
    k = g.shape[0]
    assert pad < n, "ReflectionPad2d requires pad < spatial size"
    i = np.arange(n)[:, None]
    p = np.arange(k)[None, :]
    t = i + p - pad                           # source index before reflection
    t = np.where(t < 0, -t, t)                # reflect (no edge repeat), left
    t = np.where(t >= n, 2 * n - 2 - t, t)    # reflect, right
    b = np.zeros((n, n), dtype=np.float64)
    rows = np.repeat(np.arange(n), k)
    np.add.at(b, (rows, t.ravel()), np.tile(g, n))
    return b.astype(np.float32)


# ----------------------------------------------------------------------------
# Pallas kernel: all iterations fused, block of cb slices flattened to (cb*H, W).
# ----------------------------------------------------------------------------
def _confidence_kernel(mask_ref, bh_ref, bwt_ref, out_ref, blur_ref, *, cb, h, iters):
    mask = mask_ref[...].astype(jnp.float32)          # (cb*H, W)
    one_minus = 1.0 - mask
    bh = bh_ref[...]                                  # (H, H)
    bwt = bwt_ref[...]                                # (W, W)  (already transposed)

    init = one_minus
    conf = one_minus                                  # overwritten in iteration 0
    for _ in range(iters):
        # Width blur: channel batch folded into the GEMM M dimension (one big MXU op).
        y = jnp.dot(init, bwt, preferred_element_type=jnp.float32)        # (cb*H, W)
        # Height blur: per-slice (H,H) @ (H,W); slices are sublane-aligned (H % 8 == 0).
        for c in range(cb):
            blur_ref[c * h:(c + 1) * h, :] = jnp.dot(
                bh, y[c * h:(c + 1) * h, :], preferred_element_type=jnp.float32)
        conf = blur_ref[...] * mask
        init = conf + one_minus
    out_ref[...] = conf.astype(out_ref.dtype)


# ----------------------------------------------------------------------------
# Wrapper
# ----------------------------------------------------------------------------
@functools.partial(jax.jit,
                   static_argnames=("size", "sigma", "iters", "pad", "c_block"))
def confidence_driven_mask(mask, *, size=65, sigma=1.0 / 40, iters=7, pad=32,
                           c_block=8):
    """Pallas implementation of ConfidenceDrivenMaskLayer.forward for NCHW mask."""
    n, c, h, w = mask.shape
    # TODO(synk): support H not divisible by 8 (would need row padding per slice).
    assert h % 8 == 0, "H must be a multiple of 8 for this kernel's tiling"
    nc = n * c

    g = _gauss_1d(size, sigma)
    bh = jnp.asarray(_reflect_blur_matrix(h, g, pad))          # (H, H)
    bwt = jnp.asarray(_reflect_blur_matrix(w, g, pad).T)       # (W, W)

    # ---- choose how many (n, c) slices each grid step processes -------------
    vmem_budget = 24 * 1024 * 1024        # conservative vs. 32 MiB default scoped VMEM
    per_slice = 5 * h * w * 4             # in + out (double-buffered) + scratch, f32
    cb = max(1, min(c_block, nc, vmem_budget // per_slice))
    while cb > 1 and -(-nc // cb) < 2:    # keep >= 2 grid steps (v7x: 2 TensorCores)
        cb = max(1, cb // 2)
    steps = -(-nc // cb)
    ncp = steps * cb

    x2d = mask.reshape(nc * h, w)
    if ncp != nc:
        x2d = jnp.pad(x2d, ((0, (ncp - nc) * h), (0, 0)))

    flops = 2.0 * iters * ncp * (h * w * w + h * h * w) + 3.0 * iters * ncp * h * w
    bytes_accessed = 4 * (2 * ncp * h * w + steps * (h * h + w * w))

    out2d = pl.pallas_call(
        functools.partial(_confidence_kernel, cb=cb, h=h, iters=iters),
        out_shape=jax.ShapeDtypeStruct((ncp * h, w), mask.dtype),
        grid_spec=pltpu.PrefetchScalarGridSpec(
            num_scalar_prefetch=0,
            grid=(steps,),
            in_specs=[
                pl.BlockSpec((cb * h, w), lambda i: (i, 0)),
                pl.BlockSpec((h, h), lambda i: (0, 0)),
                pl.BlockSpec((w, w), lambda i: (0, 0)),
            ],
            out_specs=pl.BlockSpec((cb * h, w), lambda i: (i, 0)),
            scratch_shapes=[pltpu.VMEM((cb * h, w), jnp.float32)],
        ),
        compiler_params=pltpu.CompilerParams(
            dimension_semantics=("parallel",)),
        cost_estimate=pl.CostEstimate(
            flops=int(flops), transcendentals=0, bytes_accessed=int(bytes_accessed)),
    )(x2d, bh, bwt)

    return out2d[: nc * h].reshape(n, c, h, w)


# ----------------------------------------------------------------------------
# Pure-JAX reference (independent formulation: real 65x65 conv on reflect-padded input)
# ----------------------------------------------------------------------------
def _reference(mask, *, size=65, sigma=1.0 / 40, iters=7, pad=32):
    g = _gauss_1d(size, sigma)
    ker2d = jnp.asarray(np.outer(g, g), dtype=jnp.float32)[None, None]   # (1,1,K,K)

    def blur(x):
        xp = jnp.pad(x, ((0, 0), (0, 0), (pad, pad), (pad, pad)), mode="reflect")
        return jax.lax.conv_general_dilated(
            xp, ker2d, window_strides=(1, 1), padding="VALID",
            dimension_numbers=("NCHW", "OIHW", "NCHW"),
            precision=jax.lax.Precision.HIGHEST)

    init = 1.0 - mask
    conf = None
    for _ in range(iters):
        conf = blur(init) * mask
        init = conf + (1.0 - mask)
    return conf


if __name__ == "__main__":
    key = jax.random.PRNGKey(0)
    # ConfidenceDrivenMaskLayer operates on a single-channel hole mask, and
    # ReflectionPad2d(32) requires spatial dims > 32 -> use a small 64x64 mask.
    mask = (jax.random.uniform(key, (2, 1, 64, 64)) > 0.5).astype(jnp.float32)

    out = confidence_driven_mask(mask)
    out = jax.block_until_ready(out)
    assert out.shape == mask.shape, out.shape

    ref = _reference(mask)
    max_err = float(jnp.max(jnp.abs(out - ref)))
    assert jnp.allclose(out, ref, atol=2e-3, rtol=2e-3), max_err

    print("KERNEL_OK")
</pallas_src>

<mosaic_0001>
module attributes {stable_mosaic.version = 11 : i64} {
  func.func @_confidence_kernel(%arg0: i32, %arg1: memref<64x64xf32, #tpu.memory_space<vmem>>, %arg2: memref<64x64xf32, #tpu.memory_space<vmem>>, %arg3: memref<64x64xf32, #tpu.memory_space<vmem>>, %arg4: memref<64x64xf32, #tpu.memory_space<vmem>>, %arg5: memref<64x64xf32, #tpu.memory_space<vmem>>) attributes {dimension_semantics = [#tpu.dimension_semantics<parallel>], iteration_bounds = array<i64: 2>, scalar_prefetch = 0 : i64, scratch_operands = 1 : i64, tpu.core_type = #tpu.core_type<tc>, window_params = [{transform_indices = @transform_0, window_bounds = array<i64: 64, 64>}, {pipeline_mode = #tpu.pipeline_mode<synchronous>, transform_indices = @transform_1, window_bounds = array<i64: 64, 64>}, {pipeline_mode = #tpu.pipeline_mode<synchronous>, transform_indices = @transform_2, window_bounds = array<i64: 64, 64>}, {transform_indices = @transform_3, window_bounds = array<i64: 64, 64>}]} {
    %c0 = arith.constant 0 : index
    %c0_0 = arith.constant 0 : index
    %0 = vector.load %arg1[%c0, %c0_0] : memref<64x64xf32, #tpu.memory_space<vmem>>, vector<64x64xf32>
    %cst = arith.constant 1.000000e+00 : f32
    %1 = vector.broadcast %cst : f32 to vector<64x64xf32>
    %2 = arith.subf %1, %0 : vector<64x64xf32>
    %c0_1 = arith.constant 0 : index
    %c0_2 = arith.constant 0 : index
    %3 = vector.load %arg2[%c0_1, %c0_2] : memref<64x64xf32, #tpu.memory_space<vmem>>, vector<64x64xf32>
    %c0_3 = arith.constant 0 : index
    %c0_4 = arith.constant 0 : index
    %4 = vector.load %arg3[%c0_3, %c0_4] : memref<64x64xf32, #tpu.memory_space<vmem>>, vector<64x64xf32>
    %cst_5 = arith.constant dense<0.000000e+00> : vector<64x64xf32>
    %5 = tpu.matmul %2, %4, %cst_5 {dimension_numbers = #tpu.dot_dimension_numbers<[1], [0], [0], [1], [0, 0, 1, 1], [], []>} : vector<64x64xf32>, vector<64x64xf32>, vector<64x64xf32> -> vector<64x64xf32>
    %cst_6 = arith.constant dense<0.000000e+00> : vector<64x64xf32>
    %6 = tpu.matmul %3, %5, %cst_6 {dimension_numbers = #tpu.dot_dimension_numbers<[1], [0], [0], [1], [0, 0, 1, 1], [], []>} : vector<64x64xf32>, vector<64x64xf32>, vector<64x64xf32> -> vector<64x64xf32>
    %c0_7 = arith.constant 0 : index
    %c0_8 = arith.constant 0 : index
    %7 = vector.load %arg5[%c0_7, %c0_8] : memref<64x64xf32, #tpu.memory_space<vmem>>, vector<64x64xf32>
    tpu.vector_store %arg5[%c0_7, %c0_8], %6 {strides = array<i32>} : memref<64x64xf32, #tpu.memory_space<vmem>>, vector<64x64xf32>,
    %c0_9 = arith.constant 0 : index
    %c0_10 = arith.constant 0 : index
    %8 = vector.load %arg5[%c0_9, %c0_10] : memref<64x64xf32, #tpu.memory_space<vmem>>, vector<64x64xf32>
    %9 = arith.mulf %8, %0 : vector<64x64xf32>
    %10 = arith.addf %9, %2 : vector<64x64xf32>
    %cst_11 = arith.constant dense<0.000000e+00> : vector<64x64xf32>
    %11 = tpu.matmul %10, %4, %cst_11 {dimension_numbers = #tpu.dot_dimension_numbers<[1], [0], [0], [1], [0, 0, 1, 1], [], []>} : vector<64x64xf32>, vector<64x64xf32>, vector<64x64xf32> -> vector<64x64xf32>
    %cst_12 = arith.constant dense<0.000000e+00> : vector<64x64xf32>
    %12 = tpu.matmul %3, %11, %cst_12 {dimension_numbers = #tpu.dot_dimension_numbers<[1], [0], [0], [1], [0, 0, 1, 1], [], []>} : vector<64x64xf32>, vector<64x64xf32>, vector<64x64xf32> -> vector<64x64xf32>
    %c0_13 = arith.constant 0 : index
    %c0_14 = arith.constant 0 : index
    %13 = vector.load %arg5[%c0_13, %c0_14] : memref<64x64xf32, #tpu.memory_space<vmem>>, vector<64x64xf32>
    tpu.vector_store %arg5[%c0_13, %c0_14], %12 {strides = array<i32>} : memref<64x64xf32, #tpu.memory_space<vmem>>, vector<64x64xf32>,
    %c0_15 = arith.constant 0 : index
    %c0_16 = arith.constant 0 : index
    %14 = vector.load %arg5[%c0_15, %c0_16] : memref<64x64xf32, #tpu.memory_space<vmem>>, vector<64x64xf32>
    %15 = arith.mulf %14, %0 : vector<64x64xf32>
    %16 = arith.addf %15, %2 : vector<64x64xf32>
    %cst_17 = arith.constant dense<0.000000e+00> : vector<64x64xf32>
    %17 = tpu.matmul %16, %4, %cst_17 {dimension_numbers = #tpu.dot_dimension_numbers<[1], [0], [0], [1], [0, 0, 1, 1], [], []>} : vector<64x64xf32>, vector<64x64xf32>, vector<64x64xf32> -> vector<64x64xf32>
    %cst_18 = arith.constant dense<0.000000e+00> : vector<64x64xf32>
    %18 = tpu.matmul %3, %17, %cst_18 {dimension_numbers = #tpu.dot_dimension_numbers<[1], [0], [0], [1], [0, 0, 1, 1], [], []>} : vector<64x64xf32>, vector<64x64xf32>, vector<64x64xf32> -> vector<64x64xf32>
    %c0_19 = arith.constant 0 : index
    %c0_20 = arith.constant 0 : index
    %19 = vector.load %arg5[%c0_19, %c0_20] : memref<64x64xf32, #tpu.memory_space<vmem>>, vector<64x64xf32>
    tpu.vector_store %arg5[%c0_19, %c0_20], %18 {strides = array<i32>} : memref<64x64xf32, #tpu.memory_space<vmem>>, vector<64x64xf32>,
    %c0_21 = arith.constant 0 : index
    %c0_22 = arith.constant 0 : index
    %20 = vector.load %arg5[%c0_21, %c0_22] : memref<64x64xf32, #tpu.memory_space<vmem>>, vector<64x64xf32>
    %21 = arith.mulf %20, %0 : vector<64x64xf32>
    %22 = arith.addf %21, %2 : vector<64x64xf32>
    %cst_23 = arith.constant dense<0.000000e+00> : vector<64x64xf32>
    %23 = tpu.matmul %22, %4, %cst_23 {dimension_numbers = #tpu.dot_dimension_numbers<[1], [0], [0], [1], [0, 0, 1, 1], [], []>} : vector<64x64xf32>, vector<64x64xf32>, vector<64x64xf32> -> vector<64x64xf32>
    %cst_24 = arith.constant dense<0.000000e+00> : vector<64x64xf32>
    %24 = tpu.matmul %3, %23, %cst_24 {dimension_numbers = #tpu.dot_dimension_numbers<[1], [0], [0], [1], [0, 0, 1, 1], [], []>} : vector<64x64xf32>, vector<64x64xf32>, vector<64x64xf32> -> vector<64x64xf32>
    %c0_25 = arith.constant 0 : index
    %c0_26 = arith.constant 0 : index
    %25 = vector.load %arg5[%c0_25, %c0_26] : memref<64x64xf32, #tpu.memory_space<vmem>>, vector<64x64xf32>
    tpu.vector_store %arg5[%c0_25, %c0_26], %24 {strides = array<i32>} : memref<64x64xf32, #tpu.memory_space<vmem>>, vector<64x64xf32>,
    %c0_27 = arith.constant 0 : index
    %c0_28 = arith.constant 0 : index
    %26 = vector.load %arg5[%c0_27, %c0_28] : memref<64x64xf32, #tpu.memory_space<vmem>>, vector<64x64xf32>
    %27 = arith.mulf %26, %0 : vector<64x64xf32>
    %28 = arith.addf %27, %2 : vector<64x64xf32>
    %cst_29 = arith.constant dense<0.000000e+00> : vector<64x64xf32>
    %29 = tpu.matmul %28, %4, %cst_29 {dimension_numbers = #tpu.dot_dimension_numbers<[1], [0], [0], [1], [0, 0, 1, 1], [], []>} : vector<64x64xf32>, vector<64x64xf32>, vector<64x64xf32> -> vector<64x64xf32>
    %cst_30 = arith.constant dense<0.000000e+00> : vector<64x64xf32>
    %30 = tpu.matmul %3, %29, %cst_30 {dimension_numbers = #tpu.dot_dimension_numbers<[1], [0], [0], [1], [0, 0, 1, 1], [], []>} : vector<64x64xf32>, vector<64x64xf32>, vector<64x64xf32> -> vector<64x64xf32>
    %c0_31 = arith.constant 0 : index
    %c0_32 = arith.constant 0 : index
    %31 = vector.load %arg5[%c0_31, %c0_32] : memref<64x64xf32, #tpu.memory_space<vmem>>, vector<64x64xf32>
    tpu.vector_store %arg5[%c0_31, %c0_32], %30 {strides = array<i32>} : memref<64x64xf32, #tpu.memory_space<vmem>>, vector<64x64xf32>,
    %c0_33 = arith.constant 0 : index
    %c0_34 = arith.constant 0 : index
    %32 = vector.load %arg5[%c0_33, %c0_34] : memref<64x64xf32, #tpu.memory_space<vmem>>, vector<64x64xf32>
    %33 = arith.mulf %32, %0 : vector<64x64xf32>
    %34 = arith.addf %33, %2 : vector<64x64xf32>
    %cst_35 = arith.constant dense<0.000000e+00> : vector<64x64xf32>
    %35 = tpu.matmul %34, %4, %cst_35 {dimension_numbers = #tpu.dot_dimension_numbers<[1], [0], [0], [1], [0, 0, 1, 1], [], []>} : vector<64x64xf32>, vector<64x64xf32>, vector<64x64xf32> -> vector<64x64xf32>
    %cst_36 = arith.constant dense<0.000000e+00> : vector<64x64xf32>
    %36 = tpu.matmul %3, %35, %cst_36 {dimension_numbers = #tpu.dot_dimension_numbers<[1], [0], [0], [1], [0, 0, 1, 1], [], []>} : vector<64x64xf32>, vector<64x64xf32>, vector<64x64xf32> -> vector<64x64xf32>
    %c0_37 = arith.constant 0 : index
    %c0_38 = arith.constant 0 : index
    %37 = vector.load %arg5[%c0_37, %c0_38] : memref<64x64xf32, #tpu.memory_space<vmem>>, vector<64x64xf32>
    tpu.vector_store %arg5[%c0_37, %c0_38], %36 {strides = array<i32>} : memref<64x64xf32, #tpu.memory_space<vmem>>, vector<64x64xf32>,
    %c0_39 = arith.constant 0 : index
    %c0_40 = arith.constant 0 : index
    %38 = vector.load %arg5[%c0_39, %c0_40] : memref<64x64xf32, #tpu.memory_space<vmem>>, vector<64x64xf32>
    %39 = arith.mulf %38, %0 : vector<64x64xf32>
    %40 = arith.addf %39, %2 : vector<64x64xf32>
    %cst_41 = arith.constant dense<0.000000e+00> : vector<64x64xf32>
    %41 = tpu.matmul %40, %4, %cst_41 {dimension_numbers = #tpu.dot_dimension_numbers<[1], [0], [0], [1], [0, 0, 1, 1], [], []>} : vector<64x64xf32>, vector<64x64xf32>, vector<64x64xf32> -> vector<64x64xf32>
    %cst_42 = arith.constant dense<0.000000e+00> : vector<64x64xf32>
    %42 = tpu.matmul %3, %41, %cst_42 {dimension_numbers = #tpu.dot_dimension_numbers<[1], [0], [0], [1], [0, 0, 1, 1], [], []>} : vector<64x64xf32>, vector<64x64xf32>, vector<64x64xf32> -> vector<64x64xf32>
    %c0_43 = arith.constant 0 : index
    %c0_44 = arith.constant 0 : index
    %43 = vector.load %arg5[%c0_43, %c0_44] : memref<64x64xf32, #tpu.memory_space<vmem>>, vector<64x64xf32>
    tpu.vector_store %arg5[%c0_43, %c0_44], %42 {strides = array<i32>} : memref<64x64xf32, #tpu.memory_space<vmem>>, vector<64x64xf32>,
    %c0_45 = arith.constant 0 : index
    %c0_46 = arith.constant 0 : index
    %44 = vector.load %arg5[%c0_45, %c0_46] : memref<64x64xf32, #tpu.memory_space<vmem>>, vector<64x64xf32>
    %45 = arith.mulf %44, %0 : vector<64x64xf32>
    %c0_47 = arith.constant 0 : index
    %c0_48 = arith.constant 0 : index
    %46 = vector.load %arg4[%c0_47, %c0_48] : memref<64x64xf32, #tpu.memory_space<vmem>>, vector<64x64xf32>
    tpu.vector_store %arg4[%c0_47, %c0_48], %45 {strides = array<i32>} : memref<64x64xf32, #tpu.memory_space<vmem>>, vector<64x64xf32>,
    return
  }
  func.func @transform_0(%arg0: i32) -> (i32, i32) {
    %c0_i32 = arith.constant 0 : i32
    %c0_i32_0 = arith.constant 0 : i32
    return %arg0, %c0_i32 : i32, i32
  }
  func.func @transform_1(%arg0: i32) -> (i32, i32) {
    %c0_i32 = arith.constant 0 : i32
    %c0_i32_0 = arith.constant 0 : i32
    %c0_i32_1 = arith.constant 0 : i32
    return %c0_i32, %c0_i32_0 : i32, i32
  }
  func.func @transform_2(%arg0: i32) -> (i32, i32) {
    %c0_i32 = arith.constant 0 : i32
    %c0_i32_0 = arith.constant 0 : i32
    %c0_i32_1 = arith.constant 0 : i32
    return %c0_i32, %c0_i32_0 : i32, i32
  }
  func.func @transform_3(%arg0: i32) -> (i32, i32) {
    %c0_i32 = arith.constant 0 : i32
    %c0_i32_0 = arith.constant 0 : i32
    return %arg0, %c0_i32 : i32, i32
  }
}

</mosaic_0001>

<llo_original>
// kernel: confidence_driven_mask.1
$region0: #{confidence_driven_mask.1}
  #allocation0 [shape = 'u32[]', space=smem, size = 0x4, offset = 0x4, fixed_abs, tag = 'smem constant byte address 0x4 - core index']
  #allocation1 [shape = 'u32[144,128]{1,0:T(1,128)}', space=vmem, size = 0x12000, scoped, tag = 'internal scratch']
  #allocation2 [shape = 'f32[64,64]{1,0:T(8,128)}', space=vmem, size = 0x8000, scoped, tag = 'scratch operand']
  %s0 = inlined_call_operand.hbm [shape: f32[128,64], index: 0, kind: input, shape index: {}]
  %s1 = inlined_call_operand.hbm [shape: f32[64,64], index: 1, kind: input, shape index: {}]
  %s2 = inlined_call_operand.hbm [shape: f32[64,64], index: 2, kind: input, shape index: {}]
  %s3 = inlined_call_operand.hbm [shape: f32[128,64], index: 3, kind: output, shape index: {}]
  %s4 = sld [smem:[#allocation0]]
  $region57: #{confidence_driven_mask.1} parent=0
    _
  %s6 = ssub.s32 1, %s4
  %s7 = scalar_select 0, %s6, %s4
  $region1: #{confidence_driven_mask.1} parent=0
    #allocation3 [shape = 'u8[65536]{0}', space=vmem, size = 0x10000, scoped, tag = 'input window, operand 0']
    #allocation4 [shape = 's32[2]{0}', space=sflag, size = 0x8, scoped, tag = 'scoped memory for confidence_driven_mask.1']
    #allocation5 [shape = 's32[2]{0}', space=sflag, size = 0x8, scoped, tag = 'scoped memory for confidence_driven_mask.1']
    #allocation6 [shape = 'u8[32768]{0}', space=vmem, size = 0x8000, scoped, tag = 'input window, operand 1, single buffered']
    #allocation7 [shape = 's32[1]{0}', space=sflag, size = 0x4, scoped, tag = 'scoped memory for confidence_driven_mask.1']
    #allocation8 [shape = 'u8[32768]{0}', space=vmem, size = 0x8000, scoped, tag = 'input window, operand 2, single buffered']
    #allocation9 [shape = 'u8[65536]{0}', space=vmem, size = 0x10000, scoped, tag = 'output window, operand 0']
    %8 = vsyncpa [#allocation4], 0
    %s9 = scalar_lea.sflag [#allocation4], 1
    %10 = vsyncpa %s9, 0
    %11 = vsyncpa [#allocation7], 0
    %12 = vsyncpa [#allocation5], 0
    %s13 = scalar_lea.sflag [#allocation5], 1
    %14 = vsyncpa %s13, 0
    loop: start=0, step=1, limit=4
    $region2: #{confidence_driven_mask.1} parent=1 // loop_pre_header
      _
    $region3: #{confidence_driven_mask.1} parent=1 // loop_header
      %s16 = sphi 0, %s20
      %p17 = scmp.ge.s32.totalorder %s16, 4
      %s26 = sphi 0, %s28
      %s29 = sphi 0, %s26
      %s30 = sphi 0, %s29
      %s46 = sphi 0, %s30
      %s50 = sphi 0, %s50
      %s52 = sphi 0, %s50
      %s53 = sphi 0, %s52
      %s67 = sphi 0, %s53
      %s71 = sphi 0, %s71
      %s73 = sphi 0, %s71
      %s74 = sphi 0, %s73
      %s88 = sphi 0, %s74
      %s94 = sphi 0, %s96
      %s97 = sphi 0, %s94
      %s98 = sphi 0, %s97
      %s114 = sphi 0, %s98
    $region4: #{confidence_driven_mask.1} parent=1 // loop_header_branch
      %19 = sbr.rel (%p17) target = $region8
    $region5: #{confidence_driven_mask.1} parent=1 // loop_body
      %s21 = ssub.s32 %s16, 1
      %s22 = ssub.s32 %s16, 2
      %s23 = sadd.s32 %s16, 1
      %s24 = ssub.s32 %s16, %s23
      %p25 = scmp.eq.s32.totalorder %s24, 0
      %s27 = sadd.s32 %s26, 1
      %s28 = scalar_select %p25, %s26, %s27
      %p31 = pneg %p25
      %p32 = scmp.eq.s32.totalorder %s16, 1
      %p33 = por %p31, %p32
      %p34 = scmp.ne.s32.totalorder %s26, %s29
      %p35 = scmp.eq.s32.totalorder %s16, 0
      %p36 = por %p34, %p35
      %p37 = scmp.ne.s32.totalorder %s26, %s29
      %p38 = scmp.eq.s32.totalorder %s21, 1
      %p39 = por %p37, %p38
      %p40 = scmp.ne.s32.totalorder %s29, %s30
      %p41 = scmp.eq.s32.totalorder %s21, 0
      %p42 = por %p40, %p41
      %p43 = scmp.ne.s32.totalorder %s29, %s30
      %p44 = scmp.eq.s32.totalorder %s22, 1
      %p45 = por %p43, %p44
      %p47 = scmp.ne.s32.totalorder %s30, %s46
      %p48 = scmp.eq.s32.totalorder %s22, 0
      %p49 = por %p47, %p48
      %s51 = sadd.s32 %s50, 1
      %p54 = scmp.eq.s32.totalorder %s16, 1
      %p55 = scmp.ne.s32.totalorder %s50, %s52
      %p56 = scmp.eq.s32.totalorder %s16, 0
      %p57 = por %p55, %p56
      %p58 = scmp.ne.s32.totalorder %s50, %s52
      %p59 = scmp.eq.s32.totalorder %s21, 1
      %p60 = por %p58, %p59
      %p61 = scmp.ne.s32.totalorder %s52, %s53
      %p62 = scmp.eq.s32.totalorder %s21, 0
      %p63 = por %p61, %p62
      %p64 = scmp.ne.s32.totalorder %s52, %s53
      %p65 = scmp.eq.s32.totalorder %s22, 1
      %p66 = por %p64, %p65
      %p68 = scmp.ne.s32.totalorder %s53, %s67
      %p69 = scmp.eq.s32.totalorder %s22, 0
      %p70 = por %p68, %p69
      %s72 = sadd.s32 %s71, 1
      %p75 = scmp.eq.s32.totalorder %s16, 1
      %p76 = scmp.ne.s32.totalorder %s71, %s73
      %p77 = scmp.eq.s32.totalorder %s16, 0
      %p78 = por %p76, %p77
      %p79 = scmp.ne.s32.totalorder %s71, %s73
      %p80 = scmp.eq.s32.totalorder %s21, 1
      %p81 = por %p79, %p80
      %p82 = scmp.ne.s32.totalorder %s73, %s74
      %p83 = scmp.eq.s32.totalorder %s21, 0
      %p84 = por %p82, %p83
      %p85 = scmp.ne.s32.totalorder %s73, %s74
      %p86 = scmp.eq.s32.totalorder %s22, 1
      %p87 = por %p85, %p86
      %p89 = scmp.ne.s32.totalorder %s74, %s88
      %p90 = scmp.eq.s32.totalorder %s22, 0
      %p91 = por %p89, %p90
      %s92 = ssub.s32 %s16, %s23
      %p93 = scmp.eq.s32.totalorder %s92, 0
      %s95 = sadd.s32 %s94, 1
      %s96 = scalar_select %p93, %s94, %s95
      %p99 = pneg %p93
      %p100 = scmp.eq.s32.totalorder %s16, 1
      %p101 = por %p99, %p100
      %p102 = scmp.ne.s32.totalorder %s94, %s97
      %p103 = scmp.eq.s32.totalorder %s16, 0
      %p104 = por %p102, %p103
      %p105 = scmp.ne.s32.totalorder %s94, %s97
      %p106 = scmp.eq.s32.totalorder %s21, 1
      %p107 = por %p105, %p106
      %p108 = scmp.ne.s32.totalorder %s97, %s98
      %p109 = scmp.eq.s32.totalorder %s21, 0
      %p110 = por %p108, %p109
      %p111 = scmp.ne.s32.totalorder %s97, %s98
      %p112 = scmp.eq.s32.totalorder %s22, 1
      %p113 = por %p111, %p112
      %p115 = scmp.ne.s32.totalorder %s98, %s114
      %p116 = scmp.eq.s32.totalorder %s22, 0
      %p117 = por %p115, %p116
      %p118 = scmp.le.s32.totalorder 1, %s16
      %p119 = scmp.lt.s32.totalorder %s16, 3
      %p120 = pnand %p118, %p119
      %p121 = pneg %p120
      // Predicated region
      $region9: #{confidence_driven_mask.1} parent=5 // pred_check
        _
      $region10: #{confidence_driven_mask.1} parent=5 // pred_check_branch
        %123 = sbr.rel (%p120) target = $region12
      $region11: #{confidence_driven_mask.1} parent=5 // pred_region
        %s124 = ssub.s32 %s16, 1
        // Predicated region
        $region13: #{confidence_driven_mask.1} parent=11 // pred_check
          %p125 = pneg %p63
        $region14: #{confidence_driven_mask.1} parent=11 // pred_check_branch
          %127 = sbr.rel (%p125) target = $region16
        $region15: #{confidence_driven_mask.1} parent=11 // pred_region
          %s129 = ssub.s32 1024, 1024
          %130 = vsyncadd [#allocation7], %s129
          %s131 = sshll.u32 [#allocation6], 4
          %s132 = int_to_ptr.vmem [resolvable:$true] %s131
          %137 = dma.hbm_to_vmem [thread:$0]  %s1, 1024, %s132, [#allocation7], 128, 128, 8
        $region16: #{confidence_driven_mask.1} parent=11 // pred_fallthru
          _
        // Predicated region
        $region17: #{confidence_driven_mask.1} parent=11 // pred_check
          %p138 = pneg %p84
        $region18: #{confidence_driven_mask.1} parent=11 // pred_check_branch
          %140 = sbr.rel (%p138) target = $region20
        $region19: #{confidence_driven_mask.1} parent=11 // pred_region
          %s142 = ssub.s32 1024, 1024
          %143 = vsyncadd [#allocation7], %s142
          %s144 = sshll.u32 [#allocation8], 4
          %s145 = int_to_ptr.vmem [resolvable:$true] %s144
          %150 = dma.hbm_to_vmem [thread:$0]  %s2, 1024, %s145, [#allocation7], 128, 128, 8
        $region20: #{confidence_driven_mask.1} parent=11 // pred_fallthru
          _
      $region12: #{confidence_driven_mask.1} parent=5 // pred_fallthru
        _
      %p151 = scmp.lt.s32.totalorder %s16, 2
      // Predicated region
      $region21: #{confidence_driven_mask.1} parent=5 // pred_check
        %p152 = pneg %p151
      $region22: #{confidence_driven_mask.1} parent=5 // pred_check_branch
        %154 = sbr.rel (%p152) target = $region24
      $region23: #{confidence_driven_mask.1} parent=5 // pred_region
        // Predicated region
        $region25: #{confidence_driven_mask.1} parent=23 // pred_check
          %p155 = pneg %p36
        $region26: #{confidence_driven_mask.1} parent=23 // pred_check_branch
          %157 = sbr.rel (%p155) target = $region28
        $region27: #{confidence_driven_mask.1} parent=23 // pred_region
          %s158 = sand.u32 %s26, 1
          %s159 = scalar_lea.sflag [#allocation4], %s158
          %s160 = sand.u32 %s26, 1
          %s161 = smul.addr %s160, 64
          %s162 = scalar_lea.vmem [#allocation3], %s161
          %s163 = smul.u32 8, %s16
          %s165 = ssub.s32 1024, 1024
          %166 = vsyncadd %s159, %s165
          %s167 = smul.addr %s163, 128
          %s168 = scalar_lea.hbm %s0, %s167
          %s169 = sshll.u32 %s162, 4
          %s170 = int_to_ptr.vmem [resolvable:$true] %s169
          %175 = dma.hbm_to_vmem [thread:$0]  %s168, 1024, %s170, %s159, 128, 128, 8
        $region28: #{confidence_driven_mask.1} parent=23 // pred_fallthru
          _
      $region24: #{confidence_driven_mask.1} parent=5 // pred_fallthru
        _
      %p176 = scmp.le.s32.totalorder 1, %s16
      %p177 = scmp.lt.s32.totalorder %s16, 3
      %p178 = pnand %p176, %p177
      %p179 = pneg %p178
      // Predicated region
      $region29: #{confidence_driven_mask.1} parent=5 // pred_check
        _
      $region30: #{confidence_driven_mask.1} parent=5 // pred_check_branch
        %181 = sbr.rel (%p178) target = $region32
      $region31: #{confidence_driven_mask.1} parent=5 // pred_region
        %s182 = ssub.s32 %s16, 1
        %s183 = sand.u32 %s29, 1
        %s184 = scalar_lea.sflag [#allocation4], %s183
        %s185 = sand.u32 %s29, 1
        %s186 = smul.addr %s185, 64
        %s187 = scalar_lea.vmem [#allocation3], %s186
        // Predicated region
        $region33: #{confidence_driven_mask.1} parent=31 // pred_check
          %p188 = pneg %p42
        $region34: #{confidence_driven_mask.1} parent=31 // pred_check_branch
          %190 = sbr.rel (%p188) target = $region36
        $region35: #{confidence_driven_mask.1} parent=31 // pred_region
          %191 = dma.done %s184, 1024
        $region36: #{confidence_driven_mask.1} parent=31 // pred_fallthru
          _
        // Predicated region
        $region37: #{confidence_driven_mask.1} parent=31 // pred_check
          %p192 = pneg %p63
        $region38: #{confidence_driven_mask.1} parent=31 // pred_check_branch
          %194 = sbr.rel (%p192) target = $region40
        $region39: #{confidence_driven_mask.1} parent=31 // pred_region
          %195 = dma.done [#allocation7], 1024
        $region40: #{confidence_driven_mask.1} parent=31 // pred_fallthru
          _
        // Predicated region
        $region41: #{confidence_driven_mask.1} parent=31 // pred_check
          %p196 = pneg %p84
        $region42: #{confidence_driven_mask.1} parent=31 // pred_check_branch
          %198 = sbr.rel (%p196) target = $region44
        $region43: #{confidence_driven_mask.1} parent=31 // pred_region
          %199 = dma.done [#allocation7], 1024
        $region44: #{confidence_driven_mask.1} parent=31 // pred_fallthru
          _
        %s200 = sand.u32 %s29, 1
        %s201 = scalar_lea.sflag [#allocation4], %s200
        %s202 = sand.u32 %s29, 1
        %s203 = smul.addr %s202, 64
        %s204 = scalar_lea.vmem [#allocation3], %s203
        %p205 = pneg %p42
        %p206 = pneg %p39
        %p207 = pneg %p63
        %p208 = pneg %p60
        %p209 = pneg %p84
        %p210 = pneg %p81
        %p211 = pneg %p110
        %p212 = pneg %p107
        %s213 = sand.u32 %s97, 1
        %s214 = scalar_lea.sflag [#allocation5], %s213
        %s215 = sand.u32 %s97, 1
        %s216 = smul.addr %s215, 64
        %s217 = scalar_lea.vmem [#allocation9], %s216
        %s218 = smul.u32 8, %s21
        %s219 = smul.u32 8, %s21
        %v220 = vld [vmem:[%s187] sm:$0xff]
        %v221 = vld [vmem:[%s187 + $0x8] sm:$0xff]
        %v222 = vld [vmem:[%s187 + $0x10] sm:$0xff]
        %v223 = vld [vmem:[%s187 + $0x18] sm:$0xff]
        %v224 = vld [vmem:[%s187 + $0x20] sm:$0xff]
        %v225 = vld [vmem:[%s187 + $0x28] sm:$0xff]
        %v226 = vld [vmem:[%s187 + $0x30] sm:$0xff]
        %v227 = vld [vmem:[%s187 + $0x38] sm:$0xff]
        %v228 = vsub.f32 1.0, %v220
        %v229 = vsub.f32 1.0, %v221
        %v230 = vsub.f32 1.0, %v222
        %v231 = vsub.f32 1.0, %v223
        %v232 = vsub.f32 1.0, %v224
        %v233 = vsub.f32 1.0, %v225
        %v234 = vsub.f32 1.0, %v226
        %v235 = vsub.f32 1.0, %v227
        %v236 = vld [vmem:[#allocation6] sm:$0xff]
        %v237 = vld [vmem:[#allocation6 + $0x8] sm:$0xff]
        %v238 = vld [vmem:[#allocation6 + $0x10] sm:$0xff]
        %v239 = vld [vmem:[#allocation6 + $0x18] sm:$0xff]
        %v240 = vld [vmem:[#allocation6 + $0x20] sm:$0xff]
        %v241 = vld [vmem:[#allocation6 + $0x28] sm:$0xff]
        %v242 = vld [vmem:[#allocation6 + $0x30] sm:$0xff]
        %v243 = vld [vmem:[#allocation6 + $0x38] sm:$0xff]
        %v244 = vld [vmem:[#allocation8] sm:$0xff]
        %v245 = vld [vmem:[#allocation8 + $0x8] sm:$0xff]
        %v246 = vld [vmem:[#allocation8 + $0x10] sm:$0xff]
        %v247 = vld [vmem:[#allocation8 + $0x18] sm:$0xff]
        %v248 = vld [vmem:[#allocation8 + $0x20] sm:$0xff]
        %v249 = vld [vmem:[#allocation8 + $0x28] sm:$0xff]
        %v250 = vld [vmem:[#allocation8 + $0x30] sm:$0xff]
        %v251 = vld [vmem:[#allocation8 + $0x38] sm:$0xff]
        %vm252 = vcmask 523264
        %v254 = vsel %vm252, %v228, 0
        %v257 = vsel %vm252, %v229, 0
        %v260 = vsel %vm252, %v230, 0
        %v263 = vsel %vm252, %v231, 0
        %v266 = vsel %vm252, %v232, 0
        %v269 = vsel %vm252, %v233, 0
        %v272 = vsel %vm252, %v234, 0
        %v275 = vsel %vm252, %v235, 0
        %277 = vmatprep.subr.mxu0 0.0
        %278 = vmatpush1.msra.mxu0 %v244
        %279 = vmatprep.subr.mxu0 0.0
        %280 = vmatpush1.msra.mxu0 %v245
        %281 = vmatprep.subr.mxu0 0.0
        %282 = vmatpush1.msra.mxu0 %v246
        %283 = vmatprep.subr.mxu0 0.0
        %284 = vmatpush1.msra.mxu0 %v247
        %285 = vmatprep.subr.mxu0 0.0
        %286 = vmatpush1.msra.mxu0 %v248
        %287 = vmatprep.subr.mxu0 0.0
        %288 = vmatpush1.msra.mxu0 %v249
        %289 = vmatprep.subr.mxu0 0.0
        %290 = vmatpush1.msra.mxu0 %v250
        %291 = vmatprep.subr.mxu0 0.0
        %292 = vmatpush1.msra.mxu0 %v251
        %293 = vmatprep.subr.mxu0 0.0
        %294 = vmatpush1.msra.mxu0 0.0
        %295 = vmatprep.subr.mxu0 0.0
        %296 = vmatpush1.msra.mxu0 0.0
        %297 = vmatprep.subr.mxu0 0.0
        %298 = vmatpush1.msra.mxu0 0.0
        %299 = vmatprep.subr.mxu0 0.0
        %300 = vmatpush1.msra.mxu0 0.0
        %301 = vmatprep.subr.mxu0 0.0
        %302 = vmatpush1.msra.mxu0 0.0
        %303 = vmatprep.subr.mxu0 0.0
        %304 = vmatpush1.msra.mxu0 0.0
        %305 = vmatprep.subr.mxu0 0.0
        %306 = vmatpush1.msra.mxu0 0.0
        %307 = vmatprep.subr.mxu0 0.0
        %308 = vmatpush1.msra.mxu0 0.0
        %309 = vmatprep.subr.mxu0 0.0
        %310 = vmatpush1.msra.mxu0 0.0
        %311 = vmatprep.subr.mxu0 0.0
        %312 = vmatpush1.msra.mxu0 0.0
        %313 = vmatprep.subr.mxu0 0.0
        %314 = vmatpush1.msra.mxu0 0.0
        %315 = vmatprep.subr.mxu0 0.0
        %316 = vmatpush1.msra.mxu0 0.0
        %317 = vmatprep.subr.mxu0 0.0
        %318 = vmatpush1.msra.mxu0 0.0
        %319 = vmatprep.subr.mxu0 0.0
        %320 = vmatpush1.msra.mxu0 0.0
        %321 = vmatprep.subr.mxu0 0.0
        %322 = vmatpush1.msra.mxu0 0.0
        %323 = vmatprep.subr.mxu0 0.0
        %324 = vmatpush1.msra.mxu0 0.0
        %325 = vmatprep.subr.mxu0 0.0
        %326 = vmatpush1.msra.mxu0 0.0
        %327 = vmatprep.subr.mxu0 0.0
        %328 = vmatpush1.msra.mxu0 0.0
        %329 = vmatprep.subr.mxu0 0.0
        %330 = vmatpush1.msra.mxu0 0.0
        %331 = vmatprep.subr.mxu0 0.0
        %332 = vmatpush1.msra.mxu0 0.0
        %333 = vmatprep.subr.mxu0 0.0
        %334 = vmatpush1.msra.mxu0 0.0
        %335 = vmatprep.subr.mxu0 0.0
        %336 = vmatpush1.msra.mxu0 0.0
        %337 = vmatprep.subr.mxu0 0.0
        %338 = vmatpush1.msra.mxu0 0.0
        %339 = vmatprep.subr.mxu0 0.0
        %340 = vmatpush1.msra.mxu0 0.0
        %341 = vmatprep.mubr.f32.mxu0 0.0
        %342 = vmatmul.mubr.f32.gmra.mrb[0].mxu0 %v254
        %v343 = vpop.f32.mrb[0].mxu0
        %v344 = vadd.f32 0.0, %v343
        %v345 = vpop.f32.mrb[0].mxu0
        %346 = vmatprep.mubr.f32.mxu0 0.0
        %347 = vmatmul.mubr.f32.gmra.mrb[0].mxu0 %v257
        %v348 = vpop.f32.mrb[0].mxu0
        %v349 = vadd.f32 0.0, %v348
        %v350 = vpop.f32.mrb[0].mxu0
        %351 = vmatprep.mubr.f32.mxu0 0.0
        %352 = vmatmul.mubr.f32.gmra.mrb[0].mxu0 %v260
        %v353 = vpop.f32.mrb[0].mxu0
        %v354 = vadd.f32 0.0, %v353
        %v355 = vpop.f32.mrb[0].mxu0
        %356 = vmatprep.mubr.f32.mxu0 0.0
        %357 = vmatmul.mubr.f32.gmra.mrb[0].mxu0 %v263
        %v358 = vpop.f32.mrb[0].mxu0
        %v359 = vadd.f32 0.0, %v358
        %v360 = vpop.f32.mrb[0].mxu0
        %361 = vmatprep.mubr.f32.mxu0 0.0
        %362 = vmatmul.mubr.f32.gmra.mrb[0].mxu0 %v266
        %v363 = vpop.f32.mrb[0].mxu0
        %v364 = vadd.f32 0.0, %v363
        %v365 = vpop.f32.mrb[0].mxu0
        %366 = vmatprep.mubr.f32.mxu0 0.0
        %367 = vmatmul.mubr.f32.gmra.mrb[0].mxu0 %v269
        %v368 = vpop.f32.mrb[0].mxu0
        %v369 = vadd.f32 0.0, %v368
        %v370 = vpop.f32.mrb[0].mxu0
        %371 = vmatprep.mubr.f32.mxu0 0.0
        %372 = vmatmul.mubr.f32.gmra.mrb[0].mxu0 %v272
        %v373 = vpop.f32.mrb[0].mxu0
        %v374 = vadd.f32 0.0, %v373
        %v375 = vpop.f32.mrb[0].mxu0
        %376 = vmatprep.mubr.f32.mxu0 0.0
        %377 = vmatmul.mubr.f32.gmra.mrb[0].mxu0 %v275
        %v378 = vpop.f32.mrb[0].mxu0
        %v379 = vadd.f32 0.0, %v378
        %v380 = vpop.f32.mrb[0].mxu0
        %381 = vdwg.mxu0
        %v383 = vsel %vm252, %v236, 0
        %v386 = vsel %vm252, %v237, 0
        %v389 = vsel %vm252, %v238, 0
        %v392 = vsel %vm252, %v239, 0
        %v395 = vsel %vm252, %v240, 0
        %v398 = vsel %vm252, %v241, 0
        %v401 = vsel %vm252, %v242, 0
        %v404 = vsel %vm252, %v243, 0
        %406 = vmatprep.subr.mxu0 0.0
        %407 = vmatpush1.msra.mxu0 %v344
        %408 = vmatprep.subr.mxu0 0.0
        %409 = vmatpush1.msra.mxu0 %v349
        %410 = vmatprep.subr.mxu0 0.0
        %411 = vmatpush1.msra.mxu0 %v354
        %412 = vmatprep.subr.mxu0 0.0
        %413 = vmatpush1.msra.mxu0 %v359
        %414 = vmatprep.subr.mxu0 0.0
        %415 = vmatpush1.msra.mxu0 %v364
        %416 = vmatprep.subr.mxu0 0.0
        %417 = vmatpush1.msra.mxu0 %v369
        %418 = vmatprep.subr.mxu0 0.0
        %419 = vmatpush1.msra.mxu0 %v374
        %420 = vmatprep.subr.mxu0 0.0
        %421 = vmatpush1.msra.mxu0 %v379
        %422 = vmatprep.subr.mxu0 0.0
        %423 = vmatpush1.msra.mxu0 0.0
        %424 = vmatprep.subr.mxu0 0.0
        %425 = vmatpush1.msra.mxu0 0.0
        %426 = vmatprep.subr.mxu0 0.0
        %427 = vmatpush1.msra.mxu0 0.0
        %428 = vmatprep.subr.mxu0 0.0
        %429 = vmatpush1.msra.mxu0 0.0
        %430 = vmatprep.subr.mxu0 0.0
        %431 = vmatpush1.msra.mxu0 0.0
        %432 = vmatprep.subr.mxu0 0.0
        %433 = vmatpush1.msra.mxu0 0.0
        %434 = vmatprep.subr.mxu0 0.0
        %435 = vmatpush1.msra.mxu0 0.0
        %436 = vmatprep.subr.mxu0 0.0
        %437 = vmatpush1.msra.mxu0 0.0
        %438 = vmatprep.subr.mxu0 0.0
        %439 = vmatpush1.msra.mxu0 0.0
        %440 = vmatprep.subr.mxu0 0.0
        %441 = vmatpush1.msra.mxu0 0.0
        %442 = vmatprep.subr.mxu0 0.0
        %443 = vmatpush1.msra.mxu0 0.0
        %444 = vmatprep.subr.mxu0 0.0
        %445 = vmatpush1.msra.mxu0 0.0
        %446 = vmatprep.subr.mxu0 0.0
        %447 = vmatpush1.msra.mxu0 0.0
        %448 = vmatprep.subr.mxu0 0.0
        %449 = vmatpush1.msra.mxu0 0.0
        %450 = vmatprep.subr.mxu0 0.0
        %451 = vmatpush1.msra.mxu0 0.0
        %452 = vmatprep.subr.mxu0 0.0
        %453 = vmatpush1.msra.mxu0 0.0
        %454 = vmatprep.subr.mxu0 0.0
        %455 = vmatpush1.msra.mxu0 0.0
        %456 = vmatprep.subr.mxu0 0.0
        %457 = vmatpush1.msra.mxu0 0.0
        %458 = vmatprep.subr.mxu0 0.0
        %459 = vmatpush1.msra.mxu0 0.0
        %460 = vmatprep.subr.mxu0 0.0
        %461 = vmatpush1.msra.mxu0 0.0
        %462 = vmatprep.subr.mxu0 0.0
        %463 = vmatpush1.msra.mxu0 0.0
        %464 = vmatprep.subr.mxu0 0.0
        %465 = vmatpush1.msra.mxu0 0.0
        %466 = vmatprep.subr.mxu0 0.0
        %467 = vmatpush1.msra.mxu0 0.0
        %468 = vmatprep.subr.mxu0 0.0
        %469 = vmatpush1.msra.mxu0 0.0
        %470 = vmatprep.mubr.f32.mxu0 0.0
        %471 = vmatmul.mubr.f32.gmra.mrb[0].mxu0 %v383
        %v472 = vpop.f32.mrb[0].mxu0
        %v473 = vadd.f32 0.0, %v472
        %v474 = vpop.f32.mrb[0].mxu0
        %475 = vmatprep.mubr.f32.mxu0 0.0
        %476 = vmatmul.mubr.f32.gmra.mrb[0].mxu0 %v386
        %v477 = vpop.f32.mrb[0].mxu0
        %v478 = vadd.f32 0.0, %v477
        %v479 = vpop.f32.mrb[0].mxu0
        %480 = vmatprep.mubr.f32.mxu0 0.0
        %481 = vmatmul.mubr.f32.gmra.mrb[0].mxu0 %v389
        %v482 = vpop.f32.mrb[0].mxu0
        %v483 = vadd.f32 0.0, %v482
        %v484 = vpop.f32.mrb[0].mxu0
        %485 = vmatprep.mubr.f32.mxu0 0.0
        %486 = vmatmul.mubr.f32.gmra.mrb[0].mxu0 %v392
        %v487 = vpop.f32.mrb[0].mxu0
        %v488 = vadd.f32 0.0, %v487
        %v489 = vpop.f32.mrb[0].mxu0
        %490 = vmatprep.mubr.f32.mxu0 0.0
        %491 = vmatmul.mubr.f32.gmra.mrb[0].mxu0 %v395
        %v492 = vpop.f32.mrb[0].mxu0
        %v493 = vadd.f32 0.0, %v492
        %v494 = vpop.f32.mrb[0].mxu0
        %495 = vmatprep.mubr.f32.mxu0 0.0
        %496 = vmatmul.mubr.f32.gmra.mrb[0].mxu0 %v398
        %v497 = vpop.f32.mrb[0].mxu0
        %v498 = vadd.f32 0.0, %v497
        %v499 = vpop.f32.mrb[0].mxu0
        %500 = vmatprep.mubr.f32.mxu0 0.0
        %501 = vmatmul.mubr.f32.gmra.mrb[0].mxu0 %v401
        %v502 = vpop.f32.mrb[0].mxu0
        %v503 = vadd.f32 0.0, %v502
        %v504 = vpop.f32.mrb[0].mxu0
        %505 = vmatprep.mubr.f32.mxu0 0.0
        %506 = vmatmul.mubr.f32.gmra.mrb[0].mxu0 %v404
        %v507 = vpop.f32.mrb[0].mxu0
        %v508 = vadd.f32 0.0, %v507
        %v509 = vpop.f32.mrb[0].mxu0
        %510 = vdwg.mxu0
        %511 = vst.msk [vmem:[#allocation2] sm:$0xff] %vm252, %v473
        %512 = vst.msk [vmem:[#allocation2 + $0x8] sm:$0xff] %vm252, %v478
        %513 = vst.msk [vmem:[#allocation2 + $0x10] sm:$0xff] %vm252, %v483
        %514 = vst.msk [vmem:[#allocation2 + $0x18] sm:$0xff] %vm252, %v488
        %515 = vst.msk [vmem:[#allocation2 + $0x20] sm:$0xff] %vm252, %v493
        %516 = vst.msk [vmem:[#allocation2 + $0x28] sm:$0xff] %vm252, %v498
        %517 = vst.msk [vmem:[#allocation2 + $0x30] sm:$0xff] %vm252, %v503
        %518 = vst.msk [vmem:[#allocation2 + $0x38] sm:$0xff] %vm252, %v508
        %v519 = vld [vmem:[#allocation2] sm:$0xff]
        %v520 = vld [vmem:[#allocation2 + $0x8] sm:$0xff]
        %v521 = vld [vmem:[#allocation2 + $0x10] sm:$0xff]
        %v522 = vld [vmem:[#allocation2 + $0x18] sm:$0xff]
        %v523 = vld [vmem:[#allocation2 + $0x20] sm:$0xff]
        %v524 = vld [vmem:[#allocation2 + $0x28] sm:$0xff]
        %v525 = vld [vmem:[#allocation2 + $0x30] sm:$0xff]
        %v526 = vld [vmem:[#allocation2 + $0x38] sm:$0xff]
        %v527 = vmul.f32 %v519, %v220
        %v528 = vmul.f32 %v520, %v221
        %v529 = vmul.f32 %v521, %v222
        %v530 = vmul.f32 %v522, %v223
        %v531 = vmul.f32 %v523, %v224
        %v532 = vmul.f32 %v524, %v225
        %v533 = vmul.f32 %v525, %v226
        %v534 = vmul.f32 %v526, %v227
        %v535 = vadd.f32 %v527, %v228
        %v536 = vadd.f32 %v528, %v229
        %v537 = vadd.f32 %v529, %v230
        %v538 = vadd.f32 %v530, %v231
        %v539 = vadd.f32 %v531, %v232
        %v540 = vadd.f32 %v532, %v233
        %v541 = vadd.f32 %v533, %v234
        %v542 = vadd.f32 %v534, %v235
        %v544 = vsel %vm252, %v535, 0
        %v547 = vsel %vm252, %v536, 0
        %v550 = vsel %vm252, %v537, 0
        %v553 = vsel %vm252, %v538, 0
        %v556 = vsel %vm252, %v539, 0
        %v559 = vsel %vm252, %v540, 0
        %v562 = vsel %vm252, %v541, 0
        %v565 = vsel %vm252, %v542, 0
        %567 = vmatprep.subr.mxu0 0.0
        %568 = vmatpush1.msra.mxu0 %v244
        %569 = vmatprep.subr.mxu0 0.0
        %570 = vmatpush1.msra.mxu0 %v245
        %571 = vmatprep.subr.mxu0 0.0
        %572 = vmatpush1.msra.mxu0 %v246
        %573 = vmatprep.subr.mxu0 0.0
        %574 = vmatpush1.msra.mxu0 %v247
        %575 = vmatprep.subr.mxu0 0.0
        %576 = vmatpush1.msra.mxu0 %v248
        %577 = vmatprep.subr.mxu0 0.0
        %578 = vmatpush1.msra.mxu0 %v249
        %579 = vmatprep.subr.mxu0 0.0
        %580 = vmatpush1.msra.mxu0 %v250
        %581 = vmatprep.subr.mxu0 0.0
        %582 = vmatpush1.msra.mxu0 %v251
        %583 = vmatprep.subr.mxu0 0.0
        %584 = vmatpush1.msra.mxu0 0.0
        %585 = vmatprep.subr.mxu0 0.0
        %586 = vmatpush1.msra.mxu0 0.0
        %587 = vmatprep.subr.mxu0 0.0
        %588 = vmatpush1.msra.mxu0 0.0
        %589 = vmatprep.subr.mxu0 0.0
        %590 = vmatpush1.msra.mxu0 0.0
        %591 = vmatprep.subr.mxu0 0.0
        %592 = vmatpush1.msra.mxu0 0.0
        %593 = vmatprep.subr.mxu0 0.0
        %594 = vmatpush1.msra.mxu0 0.0
        %595 = vmatprep.subr.mxu0 0.0
        %596 = vmatpush1.msra.mxu0 0.0
        %597 = vmatprep.subr.mxu0 0.0
        %598 = vmatpush1.msra.mxu0 0.0
        %599 = vmatprep.subr.mxu0 0.0
        %600 = vmatpush1.msra.mxu0 0.0
        %601 = vmatprep.subr.mxu0 0.0
        %602 = vmatpush1.msra.mxu0 0.0
        %603 = vmatprep.subr.mxu0 0.0
        %604 = vmatpush1.msra.mxu0 0.0
        %605 = vmatprep.subr.mxu0 0.0
        %606 = vmatpush1.msra.mxu0 0.0
        %607 = vmatprep.subr.mxu0 0.0
        %608 = vmatpush1.msra.mxu0 0.0
        %609 = vmatprep.subr.mxu0 0.0
        %610 = vmatpush1.msra.mxu0 0.0
        %611 = vmatprep.subr.mxu0 0.0
        %612 = vmatpush1.msra.mxu0 0.0
        %613 = vmatprep.subr.mxu0 0.0
        %614 = vmatpush1.msra.mxu0 0.0
        %615 = vmatprep.subr.mxu0 0.0
        %616 = vmatpush1.msra.mxu0 0.0
        %617 = vmatprep.subr.mxu0 0.0
        %618 = vmatpush1.msra.mxu0 0.0
        %619 = vmatprep.subr.mxu0 0.0
        %620 = vmatpush1.msra.mxu0 0.0
        %621 = vmatprep.subr.mxu0 0.0
        %622 = vmatpush1.msra.mxu0 0.0
        %623 = vmatprep.subr.mxu0 0.0
        %624 = vmatpush1.msra.mxu0 0.0
        %625 = vmatprep.subr.mxu0 0.0
        %626 = vmatpush1.msra.mxu0 0.0
        %627 = vmatprep.subr.mxu0 0.0
        %628 = vmatpush1.msra.mxu0 0.0
        %629 = vmatprep.subr.mxu0 0.0
        %630 = vmatpush1.msra.mxu0 0.0
        %631 = vmatprep.mubr.f32.mxu0 0.0
        %632 = vmatmul.mubr.f32.gmra.mrb[0].mxu0 %v544
        %v633 = vpop.f32.mrb[0].mxu0
        %v634 = vadd.f32 0.0, %v633
        %v635 = vpop.f32.mrb[0].mxu0
        %636 = vmatprep.mubr.f32.mxu0 0.0
        %637 = vmatmul.mubr.f32.gmra.mrb[0].mxu0 %v547
        %v638 = vpop.f32.mrb[0].mxu0
        %v639 = vadd.f32 0.0, %v638
        %v640 = vpop.f32.mrb[0].mxu0
        %641 = vmatprep.mubr.f32.mxu0 0.0
        %642 = vmatmul.mubr.f32.gmra.mrb[0].mxu0 %v550
        %v643 = vpop.f32.mrb[0].mxu0
        %v644 = vadd.f32 0.0, %v643
        %v645 = vpop.f32.mrb[0].mxu0
        %646 = vmatprep.mubr.f32.mxu0 0.0
        %647 = vmatmul.mubr.f32.gmra.mrb[0].mxu0 %v553
        %v648 = vpop.f32.mrb[0].mxu0
        %v649 = vadd.f32 0.0, %v648
        %v650 = vpop.f32.mrb[0].mxu0
        %651 = vmatprep.mubr.f32.mxu0 0.0
        %652 = vmatmul.mubr.f32.gmra.mrb[0].mxu0 %v556
        %v653 = vpop.f32.mrb[0].mxu0
        %v654 = vadd.f32 0.0, %v653
        %v655 = vpop.f32.mrb[0].mxu0
        %656 = vmatprep.mubr.f32.mxu0 0.0
        %657 = vmatmul.mubr.f32.gmra.mrb[0].mxu0 %v559
        %v658 = vpop.f32.mrb[0].mxu0
        %v659 = vadd.f32 0.0, %v658
        %v660 = vpop.f32.mrb[0].mxu0
        %661 = vmatprep.mubr.f32.mxu0 0.0
        %662 = vmatmul.mubr.f32.gmra.mrb[0].mxu0 %v562
        %v663 = vpop.f32.mrb[0].mxu0
        %v664 = vadd.f32 0.0, %v663
        %v665 = vpop.f32.mrb[0].mxu0
        %666 = vmatprep.mubr.f32.mxu0 0.0
        %667 = vmatmul.mubr.f32.gmra.mrb[0].mxu0 %v565
        %v668 = vpop.f32.mrb[0].mxu0
        %v669 = vadd.f32 0.0, %v668
        %v670 = vpop.f32.mrb[0].mxu0
        %671 = vdwg.mxu0
        %672 = vmatprep.subr.mxu0 0.0
        %673 = vmatpush1.msra.mxu0 %v634
        %674 = vmatprep.subr.mxu0 0.0
        %675 = vmatpush1.msra.mxu0 %v639
        %676 = vmatprep.subr.mxu0 0.0
        %677 = vmatpush1.msra.mxu0 %v644
        %678 = vmatprep.subr.mxu0 0.0
        %679 = vmatpush1.msra.mxu0 %v649
        %680 = vmatprep.subr.mxu0 0.0
        %681 = vmatpush1.msra.mxu0 %v654
        %682 = vmatprep.subr.mxu0 0.0
        %683 = vmatpush1.msra.mxu0 %v659
        %684 = vmatprep.subr.mxu0 0.0
        %685 = vmatpush1.msra.mxu0 %v664
        %686 = vmatprep.subr.mxu0 0.0
        %687 = vmatpush1.msra.mxu0 %v669
        %688 = vmatprep.subr.mxu0 0.0
        %689 = vmatpush1.msra.mxu0 0.0
        %690 = vmatprep.subr.mxu0 0.0
        %691 = vmatpush1.msra.mxu0 0.0
        %692 = vmatprep.subr.mxu0 0.0
        %693 = vmatpush1.msra.mxu0 0.0
        %694 = vmatprep.subr.mxu0 0.0
        %695 = vmatpush1.msra.mxu0 0.0
        %696 = vmatprep.subr.mxu0 0.0
        %697 = vmatpush1.msra.mxu0 0.0
        %698 = vmatprep.subr.mxu0 0.0
        %699 = vmatpush1.msra.mxu0 0.0
        %700 = vmatprep.subr.mxu0 0.0
        %701 = vmatpush1.msra.mxu0 0.0
        %702 = vmatprep.subr.mxu0 0.0
        %703 = vmatpush1.msra.mxu0 0.0
        %704 = vmatprep.subr.mxu0 0.0
        %705 = vmatpush1.msra.mxu0 0.0
        %706 = vmatprep.subr.mxu0 0.0
        %707 = vmatpush1.msra.mxu0 0.0
        %708 = vmatprep.subr.mxu0 0.0
        %709 = vmatpush1.msra.mxu0 0.0
        %710 = vmatprep.subr.mxu0 0.0
        %711 = vmatpush1.msra.mxu0 0.0
        %712 = vmatprep.subr.mxu0 0.0
        %713 = vmatpush1.msra.mxu0 0.0
        %714 = vmatprep.subr.mxu0 0.0
        %715 = vmatpush1.msra.mxu0 0.0
        %716 = vmatprep.subr.mxu0 0.0
        %717 = vmatpush1.msra.mxu0 0.0
        %718 = vmatprep.subr.mxu0 0.0
        %719 = vmatpush1.msra.mxu0 0.0
        %720 = vmatprep.subr.mxu0 0.0
        %721 = vmatpush1.msra.mxu0 0.0
        %722 = vmatprep.subr.mxu0 0.0
        %723 = vmatpush1.msra.mxu0 0.0
        %724 = vmatprep.subr.mxu0 0.0
        %725 = vmatpush1.msra.mxu0 0.0
        %726 = vmatprep.subr.mxu0 0.0
        %727 = vmatpush1.msra.mxu0 0.0
        %728 = vmatprep.subr.mxu0 0.0
        %729 = vmatpush1.msra.mxu0 0.0
        %730 = vmatprep.subr.mxu0 0.0
        %731 = vmatpush1.msra.mxu0 0.0
        %732 = vmatprep.subr.mxu0 0.0
        %733 = vmatpush1.msra.mxu0 0.0
        %734 = vmatprep.subr.mxu0 0.0
        %735 = vmatpush1.msra.mxu0 0.0
        %736 = vmatprep.mubr.f32.mxu0 0.0
        %737 = vmatmul.mubr.f32.gmra.mrb[0].mxu0 %v383
        %v738 = vpop.f32.mrb[0].mxu0
        %v739 = vadd.f32 0.0, %v738
        %v740 = vpop.f32.mrb[0].mxu0
        %741 = vmatprep.mubr.f32.mxu0 0.0
        %742 = vmatmul.mubr.f32.gmra.mrb[0].mxu0 %v386
        %v743 = vpop.f32.mrb[0].mxu0
        %v744 = vadd.f32 0.0, %v743
        %v745 = vpop.f32.mrb[0].mxu0
        %746 = vmatprep.mubr.f32.mxu0 0.0
        %747 = vmatmul.mubr.f32.gmra.mrb[0].mxu0 %v389
        %v748 = vpop.f32.mrb[0].mxu0
        %v749 = vadd.f32 0.0, %v748
        %v750 = vpop.f32.mrb[0].mxu0
        %751 = vmatprep.mubr.f32.mxu0 0.0
        %752 = vmatmul.mubr.f32.gmra.mrb[0].mxu0 %v392
        %v753 = vpop.f32.mrb[0].mxu0
        %v754 = vadd.f32 0.0, %v753
        %v755 = vpop.f32.mrb[0].mxu0
        %756 = vmatprep.mubr.f32.mxu0 0.0
        %757 = vmatmul.mubr.f32.gmra.mrb[0].mxu0 %v395
        %v758 = vpop.f32.mrb[0].mxu0
        %v759 = vadd.f32 0.0, %v758
        %v760 = vpop.f32.mrb[0].mxu0
        %761 = vmatprep.mubr.f32.mxu0 0.0
        %762 = vmatmul.mubr.f32.gmra.mrb[0].mxu0 %v398
        %v763 = vpop.f32.mrb[0].mxu0
        %v764 = vadd.f32 0.0, %v763
        %v765 = vpop.f32.mrb[0].mxu0
        %766 = vmatprep.mubr.f32.mxu0 0.0
        %767 = vmatmul.mubr.f32.gmra.mrb[0].mxu0 %v401
        %v768 = vpop.f32.mrb[0].mxu0
        %v769 = vadd.f32 0.0, %v768
        %v770 = vpop.f32.mrb[0].mxu0
        %771 = vmatprep.mubr.f32.mxu0 0.0
        %772 = vmatmul.mubr.f32.gmra.mrb[0].mxu0 %v404
        %v773 = vpop.f32.mrb[0].mxu0
        %v774 = vadd.f32 0.0, %v773
        %v775 = vpop.f32.mrb[0].mxu0
        %776 = vdwg.mxu0
        %777 = vst.msk [vmem:[#allocation2] sm:$0xff] %vm252, %v739
        %778 = vst.msk [vmem:[#allocation2 + $0x8] sm:$0xff] %vm252, %v744
        %779 = vst.msk [vmem:[#allocation2 + $0x10] sm:$0xff] %vm252, %v749
        %780 = vst.msk [vmem:[#allocation2 + $0x18] sm:$0xff] %vm252, %v754
        %781 = vst.msk [vmem:[#allocation2 + $0x20] sm:$0xff] %vm252, %v759
        %782 = vst.msk [vmem:[#allocation2 + $0x28] sm:$0xff] %vm252, %v764
        %783 = vst.msk [vmem:[#allocation2 + $0x30] sm:$0xff] %vm252, %v769
        %784 = vst.msk [vmem:[#allocation2 + $0x38] sm:$0xff] %vm252, %v774
        %v785 = vld [vmem:[#allocation2] sm:$0xff]
        %v786 = vld [vmem:[#allocation2 + $0x8] sm:$0xff]
        %v787 = vld [vmem:[#allocation2 + $0x10] sm:$0xff]
        %v788 = vld [vmem:[#allocation2 + $0x18] sm:$0xff]
        %v789 = vld [vmem:[#allocation2 + $0x20] sm:$0xff]
        %v790 = vld [vmem:[#allocation2 + $0x28] sm:$0xff]
        %v791 = vld [vmem:[#allocation2 + $0x30] sm:$0xff]
        %v792 = vld [vmem:[#allocation2 + $0x38] sm:$0xff]
        %v793 = vmul.f32 %v785, %v220
        %v794 = vmul.f32 %v786, %v221
        %v795 = vmul.f32 %v787, %v222
        %v796 = vmul.f32 %v788, %v223
        %v797 = vmul.f32 %v789, %v224
        %v798 = vmul.f32 %v790, %v225
        %v799 = vmul.f32 %v791, %v226
        %v800 = vmul.f32 %v792, %v227
        %v801 = vadd.f32 %v793, %v228
        %v802 = vadd.f32 %v794, %v229
        %v803 = vadd.f32 %v795, %v230
        %v804 = vadd.f32 %v796, %v231
        %v805 = vadd.f32 %v797, %v232
        %v806 = vadd.f32 %v798, %v233
        %v807 = vadd.f32 %v799, %v234
        %v808 = vadd.f32 %v800, %v235
        %v810 = vsel %vm252, %v801, 0
        %v813 = vsel %vm252, %v802, 0
        %v816 = vsel %vm252, %v803, 0
        %v819 = vsel %vm252, %v804, 0
        %v822 = vsel %vm252, %v805, 0
        %v825 = vsel %vm252, %v806, 0
        %v828 = vsel %vm252, %v807, 0
        %v831 = vsel %vm252, %v808, 0
        %833 = vmatprep.subr.mxu0 0.0
        %834 = vmatpush1.msra.mxu0 %v244
        %835 = vmatprep.subr.mxu0 0.0
        %836 = vmatpush1.msra.mxu0 %v245
        %837 = vmatprep.subr.mxu0 0.0
        %838 = vmatpush1.msra.mxu0 %v246
        %839 = vmatprep.subr.mxu0 0.0
        %840 = vmatpush1.msra.mxu0 %v247
        %841 = vmatprep.subr.mxu0 0.0
        %842 = vmatpush1.msra.mxu0 %v248
        %843 = vmatprep.subr.mxu0 0.0
        %844 = vmatpush1.msra.mxu0 %v249
        %845 = vmatprep.subr.mxu0 0.0
        %846 = vmatpush1.msra.mxu0 %v250
        %847 = vmatprep.subr.mxu0 0.0
        %848 = vmatpush1.msra.mxu0 %v251
        %849 = vmatprep.subr.mxu0 0.0
        %850 = vmatpush1.msra.mxu0 0.0
        %851 = vmatprep.subr.mxu0 0.0
        %852 = vmatpush1.msra.mxu0 0.0
        %853 = vmatprep.subr.mxu0 0.0
        %854 = vmatpush1.msra.mxu0 0.0
        %855 = vmatprep.subr.mxu0 0.0
        %856 = vmatpush1.msra.mxu0 0.0
        %857 = vmatprep.subr.mxu0 0.0
        %858 = vmatpush1.msra.mxu0 0.0
        %859 = vmatprep.subr.mxu0 0.0
        %860 = vmatpush1.msra.mxu0 0.0
        %861 = vmatprep.subr.mxu0 0.0
        %862 = vmatpush1.msra.mxu0 0.0
        %863 = vmatprep.subr.mxu0 0.0
        %864 = vmatpush1.msra.mxu0 0.0
        %865 = vmatprep.subr.mxu0 0.0
        %866 = vmatpush1.msra.mxu0 0.0
        %867 = vmatprep.subr.mxu0 0.0
        %868 = vmatpush1.msra.mxu0 0.0
        %869 = vmatprep.subr.mxu0 0.0
        %870 = vmatpush1.msra.mxu0 0.0
        %871 = vmatprep.subr.mxu0 0.0
        %872 = vmatpush1.msra.mxu0 0.0
        %873 = vmatprep.subr.mxu0 0.0
        %874 = vmatpush1.msra.mxu0 0.0
        %875 = vmatprep.subr.mxu0 0.0
        %876 = vmatpush1.msra.mxu0 0.0
        %877 = vmatprep.subr.mxu0 0.0
        %878 = vmatpush1.msra.mxu0 0.0
        %879 = vmatprep.subr.mxu0 0.0
        %880 = vmatpush1.msra.mxu0 0.0
        %881 = vmatprep.subr.mxu0 0.0
        %882 = vmatpush1.msra.mxu0 0.0
        %883 = vmatprep.subr.mxu0 0.0
        %884 = vmatpush1.msra.mxu0 0.0
        %885 = vmatprep.subr.mxu0 0.0
        %886 = vmatpush1.msra.mxu0 0.0
        %887 = vmatprep.subr.mxu0 0.0
        %888 = vmatpush1.msra.mxu0 0.0
        %889 = vmatprep.subr.mxu0 0.0
        %890 = vmatpush1.msra.mxu0 0.0
        %891 = vmatprep.subr.mxu0 0.0
        %892 = vmatpush1.msra.mxu0 0.0
        %893 = vmatprep.subr.mxu0 0.0
        %894 = vmatpush1.msra.mxu0 0.0
        %895 = vmatprep.subr.mxu0 0.0
        %896 = vmatpush1.msra.mxu0 0.0
        %897 = vmatprep.mubr.f32.mxu0 0.0
        %898 = vmatmul.mubr.f32.gmra.mrb[0].mxu0 %v810
        %v899 = vpop.f32.mrb[0].mxu0
        %v900 = vadd.f32 0.0, %v899
        %v901 = vpop.f32.mrb[0].mxu0
        %902 = vmatprep.mubr.f32.mxu0 0.0
        %903 = vmatmul.mubr.f32.gmra.mrb[0].mxu0 %v813
        %v904 = vpop.f32.mrb[0].mxu0
        %v905 = vadd.f32 0.0, %v904
        %v906 = vpop.f32.mrb[0].mxu0
        %907 = vmatprep.mubr.f32.mxu0 0.0
        %908 = vmatmul.mubr.f32.gmra.mrb[0].mxu0 %v816
        %v909 = vpop.f32.mrb[0].mxu0
        %v910 = vadd.f32 0.0, %v909
        %v911 = vpop.f32.mrb[0].mxu0
        %912 = vmatprep.mubr.f32.mxu0 0.0
        %913 = vmatmul.mubr.f32.gmra.mrb[0].mxu0 %v819
        %v914 = vpop.f32.mrb[0].mxu0
        %v915 = vadd.f32 0.0, %v914
        %v916 = vpop.f32.mrb[0].mxu0
        %917 = vmatprep.mubr.f32.mxu0 0.0
        %918 = vmatmul.mubr.f32.gmra.mrb[0].mxu0 %v822
        %v919 = vpop.f32.mrb[0].mxu0
        %v920 = vadd.f32 0.0, %v919
        %v921 = vpop.f32.mrb[0].mxu0
        %922 = vmatprep.mubr.f32.mxu0 0.0
        %923 = vmatmul.mubr.f32.gmra.mrb[0].mxu0 %v825
        %v924 = vpop.f32.mrb[0].mxu0
        %v925 = vadd.f32 0.0, %v924
        %v926 = vpop.f32.mrb[0].mxu0
        %927 = vmatprep.mubr.f32.mxu0 0.0
        %928 = vmatmul.mubr.f32.gmra.mrb[0].mxu0 %v828
        %v929 = vpop.f32.mrb[0].mxu0
        %v930 = vadd.f32 0.0, %v929
        %v931 = vpop.f32.mrb[0].mxu0
        %932 = vmatprep.mubr.f32.mxu0 0.0
        %933 = vmatmul.mubr.f32.gmra.mrb[0].mxu0 %v831
        %v934 = vpop.f32.mrb[0].mxu0
        %v935 = vadd.f32 0.0, %v934
        %v936 = vpop.f32.mrb[0].mxu0
        %937 = vdwg.mxu0
        %938 = vmatprep.subr.mxu0 0.0
        %939 = vmatpush1.msra.mxu0 %v900
        %940 = vmatprep.subr.mxu0 0.0
        %941 = vmatpush1.msra.mxu0 %v905
        %942 = vmatprep.subr.mxu0 0.0
        %943 = vmatpush1.msra.mxu0 %v910
        %944 = vmatprep.subr.mxu0 0.0
        %945 = vmatpush1.msra.mxu0 %v915
        %946 = vmatprep.subr.mxu0 0.0
        %947 = vmatpush1.msra.mxu0 %v920
        %948 = vmatprep.subr.mxu0 0.0
        %949 = vmatpush1.msra.mxu0 %v925
        %950 = vmatprep.subr.mxu0 0.0
        %951 = vmatpush1.msra.mxu0 %v930
        %952 = vmatprep.subr.mxu0 0.0
        %953 = vmatpush1.msra.mxu0 %v935
        %954 = vmatprep.subr.mxu0 0.0
        %955 = vmatpush1.msra.mxu0 0.0
        %956 = vmatprep.subr.mxu0 0.0
        %957 = vmatpush1.msra.mxu0 0.0
        %958 = vmatprep.subr.mxu0 0.0
        %959 = vmatpush1.msra.mxu0 0.0
        %960 = vmatprep.subr.mxu0 0.0
        %961 = vmatpush1.msra.mxu0 0.0
        %962 = vmatprep.subr.mxu0 0.0
        %963 = vmatpush1.msra.mxu0 0.0
        %964 = vmatprep.subr.mxu0 0.0
        %965 = vmatpush1.msra.mxu0 0.0
        %966 = vmatprep.subr.mxu0 0.0
        %967 = vmatpush1.msra.mxu0 0.0
        %968 = vmatprep.subr.mxu0 0.0
        %969 = vmatpush1.msra.mxu0 0.0
        %970 = vmatprep.subr.mxu0 0.0
        %971 = vmatpush1.msra.mxu0 0.0
        %972 = vmatprep.subr.mxu0 0.0
        %973 = vmatpush1.msra.mxu0 0.0
        %974 = vmatprep.subr.mxu0 0.0
        %975 = vmatpush1.msra.mxu0 0.0
        %976 = vmatprep.subr.mxu0 0.0
        %977 = vmatpush1.msra.mxu0 0.0
        %978 = vmatprep.subr.mxu0 0.0
        %979 = vmatpush1.msra.mxu0 0.0
        %980 = vmatprep.subr.mxu0 0.0
        %981 = vmatpush1.msra.mxu0 0.0
        %982 = vmatprep.subr.mxu0 0.0
        %983 = vmatpush1.msra.mxu0 0.0
        %984 = vmatprep.subr.mxu0 0.0
        %985 = vmatpush1.msra.mxu0 0.0
        %986 = vmatprep.subr.mxu0 0.0
        %987 = vmatpush1.msra.mxu0 0.0
        %988 = vmatprep.subr.mxu0 0.0
        %989 = vmatpush1.msra.mxu0 0.0
        %990 = vmatprep.subr.mxu0 0.0
        %991 = vmatpush1.msra.mxu0 0.0
        %992 = vmatprep.subr.mxu0 0.0
        %993 = vmatpush1.msra.mxu0 0.0
        %994 = vmatprep.subr.mxu0 0.0
        %995 = vmatpush1.msra.mxu0 0.0
        %996 = vmatprep.subr.mxu0 0.0
        %997 = vmatpush1.msra.mxu0 0.0
        %998 = vmatprep.subr.mxu0 0.0
        %999 = vmatpush1.msra.mxu0 0.0
        %1000 = vmatprep.subr.mxu0 0.0
        %1001 = vmatpush1.msra.mxu0 0.0
        %1002 = vmatprep.mubr.f32.mxu0 0.0
        %1003 = vmatmul.mubr.f32.gmra.mrb[0].mxu0 %v383
        %v1004 = vpop.f32.mrb[0].mxu0
        %v1005 = vadd.f32 0.0, %v1004
        %v1006 = vpop.f32.mrb[0].mxu0
        %1007 = vmatprep.mubr.f32.mxu0 0.0
        %1008 = vmatmul.mubr.f32.gmra.mrb[0].mxu0 %v386
        %v1009 = vpop.f32.mrb[0].mxu0
        %v1010 = vadd.f32 0.0, %v1009
        %v1011 = vpop.f32.mrb[0].mxu0
        %1012 = vmatprep.mubr.f32.mxu0 0.0
        %1013 = vmatmul.mubr.f32.gmra.mrb[0].mxu0 %v389
        %v1014 = vpop.f32.mrb[0].mxu0
        %v1015 = vadd.f32 0.0, %v1014
        %v1016 = vpop.f32.mrb[0].mxu0
        %1017 = vmatprep.mubr.f32.mxu0 0.0
        %1018 = vmatmul.mubr.f32.gmra.mrb[0].mxu0 %v392
        %v1019 = vpop.f32.mrb[0].mxu0
        %v1020 = vadd.f32 0.0, %v1019
        %v1021 = vpop.f32.mrb[0].mxu0
        %1022 = vmatprep.mubr.f32.mxu0 0.0
        %1023 = vmatmul.mubr.f32.gmra.mrb[0].mxu0 %v395
        %v1024 = vpop.f32.mrb[0].mxu0
        %v1025 = vadd.f32 0.0, %v1024
        %v1026 = vpop.f32.mrb[0].mxu0
        %1027 = vmatprep.mubr.f32.mxu0 0.0
        %1028 = vmatmul.mubr.f32.gmra.mrb[0].mxu0 %v398
        %v1029 = vpop.f32.mrb[0].mxu0
        %v1030 = vadd.f32 0.0, %v1029
        %v1031 = vpop.f32.mrb[0].mxu0
        %1032 = vmatprep.mubr.f32.mxu0 0.0
        %1033 = vmatmul.mubr.f32.gmra.mrb[0].mxu0 %v401
        %v1034 = vpop.f32.mrb[0].mxu0
        %v1035 = vadd.f32 0.0, %v1034
        %v1036 = vpop.f32.mrb[0].mxu0
        %1037 = vmatprep.mubr.f32.mxu0 0.0
        %1038 = vmatmul.mubr.f32.gmra.mrb[0].mxu0 %v404
        %v1039 = vpop.f32.mrb[0].mxu0
        %v1040 = vadd.f32 0.0, %v1039
        %v1041 = vpop.f32.mrb[0].mxu0
        %1042 = vdwg.mxu0
        %1043 = vst.msk [vmem:[#allocation2] sm:$0xff] %vm252, %v1005
        %1044 = vst.msk [vmem:[#allocation2 + $0x8] sm:$0xff] %vm252, %v1010
        %1045 = vst.msk [vmem:[#allocation2 + $0x10] sm:$0xff] %vm252, %v1015
        %1046 = vst.msk [vmem:[#allocation2 + $0x18] sm:$0xff] %vm252, %v1020
        %1047 = vst.msk [vmem:[#allocation2 + $0x20] sm:$0xff] %vm252, %v1025
        %1048 = vst.msk [vmem:[#allocation2 + $0x28] sm:$0xff] %vm252, %v1030
        %1049 = vst.msk [vmem:[#allocation2 + $0x30] sm:$0xff] %vm252, %v1035
        %1050 = vst.msk [vmem:[#allocation2 + $0x38] sm:$0xff] %vm252, %v1040
        %v1051 = vld [vmem:[#allocation2] sm:$0xff]
        %v1052 = vld [vmem:[#allocation2 + $0x8] sm:$0xff]
        %v1053 = vld [vmem:[#allocation2 + $0x10] sm:$0xff]
        %v1054 = vld [vmem:[#allocation2 + $0x18] sm:$0xff]
        %v1055 = vld [vmem:[#allocation2 + $0x20] sm:$0xff]
        %v1056 = vld [vmem:[#allocation2 + $0x28] sm:$0xff]
        %v1057 = vld [vmem:[#allocation2 + $0x30] sm:$0xff]
        %v1058 = vld [vmem:[#allocation2 + $0x38] sm:$0xff]
        %v1059 = vmul.f32 %v1051, %v220
        %v1060 = vmul.f32 %v1052, %v221
        %v1061 = vmul.f32 %v1053, %v222
        %v1062 = vmul.f32 %v1054, %v223
        %v1063 = vmul.f32 %v1055, %v224
        %v1064 = vmul.f32 %v1056, %v225
        %v1065 = vmul.f32 %v1057, %v226
        %v1066 = vmul.f32 %v1058, %v227
        %v1067 = vadd.f32 %v1059, %v228
        %v1068 = vadd.f32 %v1060, %v229
        %v1069 = vadd.f32 %v1061, %v230
        %v1070 = vadd.f32 %v1062, %v231
        %v1071 = vadd.f32 %v1063, %v232
        %v1072 = vadd.f32 %v1064, %v233
        %v1073 = vadd.f32 %v1065, %v234
        %v1074 = vadd.f32 %v1066, %v235
        %v1076 = vsel %vm252, %v1067, 0
        %v1079 = vsel %vm252, %v1068, 0
        %v1082 = vsel %vm252, %v1069, 0
        %v1085 = vsel %vm252, %v1070, 0
        %v1088 = vsel %vm252, %v1071, 0
        %v1091 = vsel %vm252, %v1072, 0
        %v1094 = vsel %vm252, %v1073, 0
        %v1097 = vsel %vm252, %v1074, 0
        %1099 = vmatprep.subr.mxu0 0.0
        %1100 = vmatpush1.msra.mxu0 %v244
        %1101 = vmatprep.subr.mxu0 0.0
        %1102 = vmatpush1.msra.mxu0 %v245
        %1103 = vmatprep.subr.mxu0 0.0
        %1104 = vmatpush1.msra.mxu0 %v246
        %1105 = vmatprep.subr.mxu0 0.0
        %1106 = vmatpush1.msra.mxu0 %v247
        %1107 = vmatprep.subr.mxu0 0.0
        %1108 = vmatpush1.msra.mxu0 %v248
        %1109 = vmatprep.subr.mxu0 0.0
        %1110 = vmatpush1.msra.mxu0 %v249
        %1111 = vmatprep.subr.mxu0 0.0
        %1112 = vmatpush1.msra.mxu0 %v250
        %1113 = vmatprep.subr.mxu0 0.0
        %1114 = vmatpush1.msra.mxu0 %v251
        %1115 = vmatprep.subr.mxu0 0.0
        %1116 = vmatpush1.msra.mxu0 0.0
        %1117 = vmatprep.subr.mxu0 0.0
        %1118 = vmatpush1.msra.mxu0 0.0
        %1119 = vmatprep.subr.mxu0 0.0
        %1120 = vmatpush1.msra.mxu0 0.0
        %1121 = vmatprep.subr.mxu0 0.0
        %1122 = vmatpush1.msra.mxu0 0.0
        %1123 = vmatprep.subr.mxu0 0.0
        %1124 = vmatpush1.msra.mxu0 0.0
        %1125 = vmatprep.subr.mxu0 0.0
        %1126 = vmatpush1.msra.mxu0 0.0
        %1127 = vmatprep.subr.mxu0 0.0
        %1128 = vmatpush1.msra.mxu0 0.0
        %1129 = vmatprep.subr.mxu0 0.0
        %1130 = vmatpush1.msra.mxu0 0.0
        %1131 = vmatprep.subr.mxu0 0.0
        %1132 = vmatpush1.msra.mxu0 0.0
        %1133 = vmatprep.subr.mxu0 0.0
        %1134 = vmatpush1.msra.mxu0 0.0
        %1135 = vmatprep.subr.mxu0 0.0
        %1136 = vmatpush1.msra.mxu0 0.0
        %1137 = vmatprep.subr.mxu0 0.0
        %1138 = vmatpush1.msra.mxu0 0.0
        %1139 = vmatprep.subr.mxu0 0.0
        %1140 = vmatpush1.msra.mxu0 0.0
        %1141 = vmatprep.subr.mxu0 0.0
        %1142 = vmatpush1.msra.mxu0 0.0
        %1143 = vmatprep.subr.mxu0 0.0
        %1144 = vmatpush1.msra.mxu0 0.0
        %1145 = vmatprep.subr.mxu0 0.0
        %1146 = vmatpush1.msra.mxu0 0.0
        %1147 = vmatprep.subr.mxu0 0.0
        %1148 = vmatpush1.msra.mxu0 0.0
        %1149 = vmatprep.subr.mxu0 0.0
        %1150 = vmatpush1.msra.mxu0 0.0
        %1151 = vmatprep.subr.mxu0 0.0
        %1152 = vmatpush1.msra.mxu0 0.0
        %1153 = vmatprep.subr.mxu0 0.0
        %1154 = vmatpush1.msra.mxu0 0.0
        %1155 = vmatprep.subr.mxu0 0.0
        %1156 = vmatpush1.msra.mxu0 0.0
        %1157 = vmatprep.subr.mxu0 0.0
        %1158 = vmatpush1.msra.mxu0 0.0
        %1159 = vmatprep.subr.mxu0 0.0
        %1160 = vmatpush1.msra.mxu0 0.0
        %1161 = vmatprep.subr.mxu0 0.0
        %1162 = vmatpush1.msra.mxu0 0.0
        %1163 = vmatprep.mubr.f32.mxu0 0.0
        %1164 = vmatmul.mubr.f32.gmra.mrb[0].mxu0 %v1076
        %v1165 = vpop.f32.mrb[0].mxu0
        %v1166 = vadd.f32 0.0, %v1165
        %v1167 = vpop.f32.mrb[0].mxu0
        %1168 = vmatprep.mubr.f32.mxu0 0.0
        %1169 = vmatmul.mubr.f32.gmra.mrb[0].mxu0 %v1079
        %v1170 = vpop.f32.mrb[0].mxu0
        %v1171 = vadd.f32 0.0, %v1170
        %v1172 = vpop.f32.mrb[0].mxu0
        %1173 = vmatprep.mubr.f32.mxu0 0.0
        %1174 = vmatmul.mubr.f32.gmra.mrb[0].mxu0 %v1082
        %v1175 = vpop.f32.mrb[0].mxu0
        %v1176 = vadd.f32 0.0, %v1175
        %v1177 = vpop.f32.mrb[0].mxu0
        %1178 = vmatprep.mubr.f32.mxu0 0.0
        %1179 = vmatmul.mubr.f32.gmra.mrb[0].mxu0 %v1085
        %v1180 = vpop.f32.mrb[0].mxu0
        %v1181 = vadd.f32 0.0, %v1180
        %v1182 = vpop.f32.mrb[0].mxu0
        %1183 = vmatprep.mubr.f32.mxu0 0.0
        %1184 = vmatmul.mubr.f32.gmra.mrb[0].mxu0 %v1088
        %v1185 = vpop.f32.mrb[0].mxu0
        %v1186 = vadd.f32 0.0, %v1185
        %v1187 = vpop.f32.mrb[0].mxu0
        %1188 = vmatprep.mubr.f32.mxu0 0.0
        %1189 = vmatmul.mubr.f32.gmra.mrb[0].mxu0 %v1091
        %v1190 = vpop.f32.mrb[0].mxu0
        %v1191 = vadd.f32 0.0, %v1190
        %v1192 = vpop.f32.mrb[0].mxu0
        %1193 = vmatprep.mubr.f32.mxu0 0.0
        %1194 = vmatmul.mubr.f32.gmra.mrb[0].mxu0 %v1094
        %v1195 = vpop.f32.mrb[0].mxu0
        %v1196 = vadd.f32 0.0, %v1195
        %v1197 = vpop.f32.mrb[0].mxu0
        %1198 = vmatprep.mubr.f32.mxu0 0.0
        %1199 = vmatmul.mubr.f32.gmra.mrb[0].mxu0 %v1097
        %v1200 = vpop.f32.mrb[0].mxu0
        %v1201 = vadd.f32 0.0, %v1200
        %v1202 = vpop.f32.mrb[0].mxu0
        %1203 = vdwg.mxu0
        %1204 = vmatprep.subr.mxu0 0.0
        %1205 = vmatpush1.msra.mxu0 %v1166
        %1206 = vmatprep.subr.mxu0 0.0
        %1207 = vmatpush1.msra.mxu0 %v1171
        %1208 = vmatprep.subr.mxu0 0.0
        %1209 = vmatpush1.msra.mxu0 %v1176
        %1210 = vmatprep.subr.mxu0 0.0
        %1211 = vmatpush1.msra.mxu0 %v1181
        %1212 = vmatprep.subr.mxu0 0.0
        %1213 = vmatpush1.msra.mxu0 %v1186
        %1214 = vmatprep.subr.mxu0 0.0
        %1215 = vmatpush1.msra.mxu0 %v1191
        %1216 = vmatprep.subr.mxu0 0.0
        %1217 = vmatpush1.msra.mxu0 %v1196
        %1218 = vmatprep.subr.mxu0 0.0
        %1219 = vmatpush1.msra.mxu0 %v1201
        %1220 = vmatprep.subr.mxu0 0.0
        %1221 = vmatpush1.msra.mxu0 0.0
        %1222 = vmatprep.subr.mxu0 0.0
        %1223 = vmatpush1.msra.mxu0 0.0
        %1224 = vmatprep.subr.mxu0 0.0
        %1225 = vmatpush1.msra.mxu0 0.0
        %1226 = vmatprep.subr.mxu0 0.0
        %1227 = vmatpush1.msra.mxu0 0.0
        %1228 = vmatprep.subr.mxu0 0.0
        %1229 = vmatpush1.msra.mxu0 0.0
        %1230 = vmatprep.subr.mxu0 0.0
        %1231 = vmatpush1.msra.mxu0 0.0
        %1232 = vmatprep.subr.mxu0 0.0
        %1233 = vmatpush1.msra.mxu0 0.0
        %1234 = vmatprep.subr.mxu0 0.0
        %1235 = vmatpush1.msra.mxu0 0.0
        %1236 = vmatprep.subr.mxu0 0.0
        %1237 = vmatpush1.msra.mxu0 0.0
        %1238 = vmatprep.subr.mxu0 0.0
        %1239 = vmatpush1.msra.mxu0 0.0
        %1240 = vmatprep.subr.mxu0 0.0
        %1241 = vmatpush1.msra.mxu0 0.0
        %1242 = vmatprep.subr.mxu0 0.0
        %1243 = vmatpush1.msra.mxu0 0.0
        %1244 = vmatprep.subr.mxu0 0.0
        %1245 = vmatpush1.msra.mxu0 0.0
        %1246 = vmatprep.subr.mxu0 0.0
        %1247 = vmatpush1.msra.mxu0 0.0
        %1248 = vmatprep.subr.mxu0 0.0
        %1249 = vmatpush1.msra.mxu0 0.0
        %1250 = vmatprep.subr.mxu0 0.0
        %1251 = vmatpush1.msra.mxu0 0.0
        %1252 = vmatprep.subr.mxu0 0.0
        %1253 = vmatpush1.msra.mxu0 0.0
        %1254 = vmatprep.subr.mxu0 0.0
        %1255 = vmatpush1.msra.mxu0 0.0
        %1256 = vmatprep.subr.mxu0 0.0
        %1257 = vmatpush1.msra.mxu0 0.0
        %1258 = vmatprep.subr.mxu0 0.0
        %1259 = vmatpush1.msra.mxu0 0.0
        %1260 = vmatprep.subr.mxu0 0.0
        %1261 = vmatpush1.msra.mxu0 0.0
        %1262 = vmatprep.subr.mxu0 0.0
        %1263 = vmatpush1.msra.mxu0 0.0
        %1264 = vmatprep.subr.mxu0 0.0
        %1265 = vmatpush1.msra.mxu0 0.0
        %1266 = vmatprep.subr.mxu0 0.0
        %1267 = vmatpush1.msra.mxu0 0.0
        %1268 = vmatprep.mubr.f32.mxu0 0.0
        %1269 = vmatmul.mubr.f32.gmra.mrb[0].mxu0 %v383
        %v1270 = vpop.f32.mrb[0].mxu0
        %v1271 = vadd.f32 0.0, %v1270
        %v1272 = vpop.f32.mrb[0].mxu0
        %1273 = vmatprep.mubr.f32.mxu0 0.0
        %1274 = vmatmul.mubr.f32.gmra.mrb[0].mxu0 %v386
        %v1275 = vpop.f32.mrb[0].mxu0
        %v1276 = vadd.f32 0.0, %v1275
        %v1277 = vpop.f32.mrb[0].mxu0
        %1278 = vmatprep.mubr.f32.mxu0 0.0
        %1279 = vmatmul.mubr.f32.gmra.mrb[0].mxu0 %v389
        %v1280 = vpop.f32.mrb[0].mxu0
        %v1281 = vadd.f32 0.0, %v1280
        %v1282 = vpop.f32.mrb[0].mxu0
        %1283 = vmatprep.mubr.f32.mxu0 0.0
        %1284 = vmatmul.mubr.f32.gmra.mrb[0].mxu0 %v392
        %v1285 = vpop.f32.mrb[0].mxu0
        %v1286 = vadd.f32 0.0, %v1285
        %v1287 = vpop.f32.mrb[0].mxu0
        %1288 = vmatprep.mubr.f32.mxu0 0.0
        %1289 = vmatmul.mubr.f32.gmra.mrb[0].mxu0 %v395
        %v1290 = vpop.f32.mrb[0].mxu0
        %v1291 = vadd.f32 0.0, %v1290
        %v1292 = vpop.f32.mrb[0].mxu0
        %1293 = vmatprep.mubr.f32.mxu0 0.0
        %1294 = vmatmul.mubr.f32.gmra.mrb[0].mxu0 %v398
        %v1295 = vpop.f32.mrb[0].mxu0
        %v1296 = vadd.f32 0.0, %v1295
        %v1297 = vpop.f32.mrb[0].mxu0
        %1298 = vmatprep.mubr.f32.mxu0 0.0
        %1299 = vmatmul.mubr.f32.gmra.mrb[0].mxu0 %v401
        %v1300 = vpop.f32.mrb[0].mxu0
        %v1301 = vadd.f32 0.0, %v1300
        %v1302 = vpop.f32.mrb[0].mxu0
        %1303 = vmatprep.mubr.f32.mxu0 0.0
        %1304 = vmatmul.mubr.f32.gmra.mrb[0].mxu0 %v404
        %v1305 = vpop.f32.mrb[0].mxu0
        %v1306 = vadd.f32 0.0, %v1305
        %v1307 = vpop.f32.mrb[0].mxu0
        %1308 = vdwg.mxu0
        %1309 = vst.msk [vmem:[#allocation2] sm:$0xff] %vm252, %v1271
        %1310 = vst.msk [vmem:[#allocation2 + $0x8] sm:$0xff] %vm252, %v1276
        %1311 = vst.msk [vmem:[#allocation2 + $0x10] sm:$0xff] %vm252, %v1281
        %1312 = vst.msk [vmem:[#allocation2 + $0x18] sm:$0xff] %vm252, %v1286
        %1313 = vst.msk [vmem:[#allocation2 + $0x20] sm:$0xff] %vm252, %v1291
        %1314 = vst.msk [vmem:[#allocation2 + $0x28] sm:$0xff] %vm252, %v1296
        %1315 = vst.msk [vmem:[#allocation2 + $0x30] sm:$0xff] %vm252, %v1301
        %1316 = vst.msk [vmem:[#allocation2 + $0x38] sm:$0xff] %vm252, %v1306
        %v1317 = vld [vmem:[#allocation2] sm:$0xff]
        %v1318 = vld [vmem:[#allocation2 + $0x8] sm:$0xff]
        %v1319 = vld [vmem:[#allocation2 + $0x10] sm:$0xff]
        %v1320 = vld [vmem:[#allocation2 + $0x18] sm:$0xff]
        %v1321 = vld [vmem:[#allocation2 + $0x20] sm:$0xff]
        %v1322 = vld [vmem:[#allocation2 + $0x28] sm:$0xff]
        %v1323 = vld [vmem:[#allocation2 + $0x30] sm:$0xff]
        %v1324 = vld [vmem:[#allocation2 + $0x38] sm:$0xff]
        %v1325 = vmul.f32 %v1317, %v220
        %v1326 = vmul.f32 %v1318, %v221
        %v1327 = vmul.f32 %v1319, %v222
        %v1328 = vmul.f32 %v1320, %v223
        %v1329 = vmul.f32 %v1321, %v224
        %v1330 = vmul.f32 %v1322, %v225
        %v1331 = vmul.f32 %v1323, %v226
        %v1332 = vmul.f32 %v1324, %v227
        %v1333 = vadd.f32 %v1325, %v228
        %v1334 = vadd.f32 %v1326, %v229
        %v1335 = vadd.f32 %v1327, %v230
        %v1336 = vadd.f32 %v1328, %v231
        %v1337 = vadd.f32 %v1329, %v232
        %v1338 = vadd.f32 %v1330, %v233
        %v1339 = vadd.f32 %v1331, %v234
        %v1340 = vadd.f32 %v1332, %v235
        %v1342 = vsel %vm252, %v1333, 0
        %v1345 = vsel %vm252, %v1334, 0
        %v1348 = vsel %vm252, %v1335, 0
        %v1351 = vsel %vm252, %v1336, 0
        %v1354 = vsel %vm252, %v1337, 0
        %v1357 = vsel %vm252, %v1338, 0
        %v1360 = vsel %vm252, %v1339, 0
        %v1363 = vsel %vm252, %v1340, 0
        %1365 = vmatprep.subr.mxu0 0.0
        %1366 = vmatpush1.msra.mxu0 %v244
        %1367 = vmatprep.subr.mxu0 0.0
        %1368 = vmatpush1.msra.mxu0 %v245
        %1369 = vmatprep.subr.mxu0 0.0
        %1370 = vmatpush1.msra.mxu0 %v246
        %1371 = vmatprep.subr.mxu0 0.0
        %1372 = vmatpush1.msra.mxu0 %v247
        %1373 = vmatprep.subr.mxu0 0.0
        %1374 = vmatpush1.msra.mxu0 %v248
        %1375 = vmatprep.subr.mxu0 0.0
        %1376 = vmatpush1.msra.mxu0 %v249
        %1377 = vmatprep.subr.mxu0 0.0
        %1378 = vmatpush1.msra.mxu0 %v250
        %1379 = vmatprep.subr.mxu0 0.0
        %1380 = vmatpush1.msra.mxu0 %v251
        %1381 = vmatprep.subr.mxu0 0.0
        %1382 = vmatpush1.msra.mxu0 0.0
        %1383 = vmatprep.subr.mxu0 0.0
        %1384 = vmatpush1.msra.mxu0 0.0
        %1385 = vmatprep.subr.mxu0 0.0
        %1386 = vmatpush1.msra.mxu0 0.0
        %1387 = vmatprep.subr.mxu0 0.0
        %1388 = vmatpush1.msra.mxu0 0.0
        %1389 = vmatprep.subr.mxu0 0.0
        %1390 = vmatpush1.msra.mxu0 0.0
        %1391 = vmatprep.subr.mxu0 0.0
        %1392 = vmatpush1.msra.mxu0 0.0
        %1393 = vmatprep.subr.mxu0 0.0
        %1394 = vmatpush1.msra.mxu0 0.0
        %1395 = vmatprep.subr.mxu0 0.0
        %1396 = vmatpush1.msra.mxu0 0.0
        %1397 = vmatprep.subr.mxu0 0.0
        %1398 = vmatpush1.msra.mxu0 0.0
        %1399 = vmatprep.subr.mxu0 0.0
        %1400 = vmatpush1.msra.mxu0 0.0
        %1401 = vmatprep.subr.mxu0 0.0
        %1402 = vmatpush1.msra.mxu0 0.0
        %1403 = vmatprep.subr.mxu0 0.0
        %1404 = vmatpush1.msra.mxu0 0.0
        %1405 = vmatprep.subr.mxu0 0.0
        %1406 = vmatpush1.msra.mxu0 0.0
        %1407 = vmatprep.subr.mxu0 0.0
        %1408 = vmatpush1.msra.mxu0 0.0
        %1409 = vmatprep.subr.mxu0 0.0
        %1410 = vmatpush1.msra.mxu0 0.0
        %1411 = vmatprep.subr.mxu0 0.0
        %1412 = vmatpush1.msra.mxu0 0.0
        %1413 = vmatprep.subr.mxu0 0.0
        %1414 = vmatpush1.msra.mxu0 0.0
        %1415 = vmatprep.subr.mxu0 0.0
        %1416 = vmatpush1.msra.mxu0 0.0
        %1417 = vmatprep.subr.mxu0 0.0
        %1418 = vmatpush1.msra.mxu0 0.0
        %1419 = vmatprep.subr.mxu0 0.0
        %1420 = vmatpush1.msra.mxu0 0.0
        %1421 = vmatprep.subr.mxu0 0.0
        %1422 = vmatpush1.msra.mxu0 0.0
        %1423 = vmatprep.subr.mxu0 0.0
        %1424 = vmatpush1.msra.mxu0 0.0
        %1425 = vmatprep.subr.mxu0 0.0
        %1426 = vmatpush1.msra.mxu0 0.0
        %1427 = vmatprep.subr.mxu0 0.0
        %1428 = vmatpush1.msra.mxu0 0.0
        %1429 = vmatprep.mubr.f32.mxu0 0.0
        %1430 = vmatmul.mubr.f32.gmra.mrb[0].mxu0 %v1342
        %v1431 = vpop.f32.mrb[0].mxu0
        %v1432 = vadd.f32 0.0, %v1431
        %v1433 = vpop.f32.mrb[0].mxu0
        %1434 = vmatprep.mubr.f32.mxu0 0.0
        %1435 = vmatmul.mubr.f32.gmra.mrb[0].mxu0 %v1345
        %v1436 = vpop.f32.mrb[0].mxu0
        %v1437 = vadd.f32 0.0, %v1436
        %v1438 = vpop.f32.mrb[0].mxu0
        %1439 = vmatprep.mubr.f32.mxu0 0.0
        %1440 = vmatmul.mubr.f32.gmra.mrb[0].mxu0 %v1348
        %v1441 = vpop.f32.mrb[0].mxu0
        %v1442 = vadd.f32 0.0, %v1441
        %v1443 = vpop.f32.mrb[0].mxu0
        %1444 = vmatprep.mubr.f32.mxu0 0.0
        %1445 = vmatmul.mubr.f32.gmra.mrb[0].mxu0 %v1351
        %v1446 = vpop.f32.mrb[0].mxu0
        %v1447 = vadd.f32 0.0, %v1446
        %v1448 = vpop.f32.mrb[0].mxu0
        %1449 = vmatprep.mubr.f32.mxu0 0.0
        %1450 = vmatmul.mubr.f32.gmra.mrb[0].mxu0 %v1354
        %v1451 = vpop.f32.mrb[0].mxu0
        %v1452 = vadd.f32 0.0, %v1451
        %v1453 = vpop.f32.mrb[0].mxu0
        %1454 = vmatprep.mubr.f32.mxu0 0.0
        %1455 = vmatmul.mubr.f32.gmra.mrb[0].mxu0 %v1357
        %v1456 = vpop.f32.mrb[0].mxu0
        %v1457 = vadd.f32 0.0, %v1456
        %v1458 = vpop.f32.mrb[0].mxu0
        %1459 = vmatprep.mubr.f32.mxu0 0.0
        %1460 = vmatmul.mubr.f32.gmra.mrb[0].mxu0 %v1360
        %v1461 = vpop.f32.mrb[0].mxu0
        %v1462 = vadd.f32 0.0, %v1461
        %v1463 = vpop.f32.mrb[0].mxu0
        %1464 = vmatprep.mubr.f32.mxu0 0.0
        %1465 = vmatmul.mubr.f32.gmra.mrb[0].mxu0 %v1363
        %v1466 = vpop.f32.mrb[0].mxu0
        %v1467 = vadd.f32 0.0, %v1466
        %v1468 = vpop.f32.mrb[0].mxu0
        %1469 = vdwg.mxu0
        %1470 = vmatprep.subr.mxu0 0.0
        %1471 = vmatpush1.msra.mxu0 %v1432
        %1472 = vmatprep.subr.mxu0 0.0
        %1473 = vmatpush1.msra.mxu0 %v1437
        %1474 = vmatprep.subr.mxu0 0.0
        %1475 = vmatpush1.msra.mxu0 %v1442
        %1476 = vmatprep.subr.mxu0 0.0
        %1477 = vmatpush1.msra.mxu0 %v1447
        %1478 = vmatprep.subr.mxu0 0.0
        %1479 = vmatpush1.msra.mxu0 %v1452
        %1480 = vmatprep.subr.mxu0 0.0
        %1481 = vmatpush1.msra.mxu0 %v1457
        %1482 = vmatprep.subr.mxu0 0.0
        %1483 = vmatpush1.msra.mxu0 %v1462
        %1484 = vmatprep.subr.mxu0 0.0
        %1485 = vmatpush1.msra.mxu0 %v1467
        %1486 = vmatprep.subr.mxu0 0.0
        %1487 = vmatpush1.msra.mxu0 0.0
        %1488 = vmatprep.subr.mxu0 0.0
        %1489 = vmatpush1.msra.mxu0 0.0
        %1490 = vmatprep.subr.mxu0 0.0
        %1491 = vmatpush1.msra.mxu0 0.0
        %1492 = vmatprep.subr.mxu0 0.0
        %1493 = vmatpush1.msra.mxu0 0.0
        %1494 = vmatprep.subr.mxu0 0.0
        %1495 = vmatpush1.msra.mxu0 0.0
        %1496 = vmatprep.subr.mxu0 0.0
        %1497 = vmatpush1.msra.mxu0 0.0
        %1498 = vmatprep.subr.mxu0 0.0
        %1499 = vmatpush1.msra.mxu0 0.0
        %1500 = vmatprep.subr.mxu0 0.0
        %1501 = vmatpush1.msra.mxu0 0.0
        %1502 = vmatprep.subr.mxu0 0.0
        %1503 = vmatpush1.msra.mxu0 0.0
        %1504 = vmatprep.subr.mxu0 0.0
        %1505 = vmatpush1.msra.mxu0 0.0
        %1506 = vmatprep.subr.mxu0 0.0
        %1507 = vmatpush1.msra.mxu0 0.0
        %1508 = vmatprep.subr.mxu0 0.0
        %1509 = vmatpush1.msra.mxu0 0.0
        %1510 = vmatprep.subr.mxu0 0.0
        %1511 = vmatpush1.msra.mxu0 0.0
        %1512 = vmatprep.subr.mxu0 0.0
        %1513 = vmatpush1.msra.mxu0 0.0
        %1514 = vmatprep.subr.mxu0 0.0
        %1515 = vmatpush1.msra.mxu0 0.0
        %1516 = vmatprep.subr.mxu0 0.0
        %1517 = vmatpush1.msra.mxu0 0.0
        %1518 = vmatprep.subr.mxu0 0.0
        %1519 = vmatpush1.msra.mxu0 0.0
        %1520 = vmatprep.subr.mxu0 0.0
        %1521 = vmatpush1.msra.mxu0 0.0
        %1522 = vmatprep.subr.mxu0 0.0
        %1523 = vmatpush1.msra.mxu0 0.0
        %1524 = vmatprep.subr.mxu0 0.0
        %1525 = vmatpush1.msra.mxu0 0.0
        %1526 = vmatprep.subr.mxu0 0.0
        %1527 = vmatpush1.msra.mxu0 0.0
        %1528 = vmatprep.subr.mxu0 0.0
        %1529 = vmatpush1.msra.mxu0 0.0
        %1530 = vmatprep.subr.mxu0 0.0
        %1531 = vmatpush1.msra.mxu0 0.0
        %1532 = vmatprep.subr.mxu0 0.0
        %1533 = vmatpush1.msra.mxu0 0.0
        %1534 = vmatprep.mubr.f32.mxu0 0.0
        %1535 = vmatmul.mubr.f32.gmra.mrb[0].mxu0 %v383
        %v1536 = vpop.f32.mrb[0].mxu0
        %v1537 = vadd.f32 0.0, %v1536
        %v1538 = vpop.f32.mrb[0].mxu0
        %1539 = vmatprep.mubr.f32.mxu0 0.0
        %1540 = vmatmul.mubr.f32.gmra.mrb[0].mxu0 %v386
        %v1541 = vpop.f32.mrb[0].mxu0
        %v1542 = vadd.f32 0.0, %v1541
        %v1543 = vpop.f32.mrb[0].mxu0
        %1544 = vmatprep.mubr.f32.mxu0 0.0
        %1545 = vmatmul.mubr.f32.gmra.mrb[0].mxu0 %v389
        %v1546 = vpop.f32.mrb[0].mxu0
        %v1547 = vadd.f32 0.0, %v1546
        %v1548 = vpop.f32.mrb[0].mxu0
        %1549 = vmatprep.mubr.f32.mxu0 0.0
        %1550 = vmatmul.mubr.f32.gmra.mrb[0].mxu0 %v392
        %v1551 = vpop.f32.mrb[0].mxu0
        %v1552 = vadd.f32 0.0, %v1551
        %v1553 = vpop.f32.mrb[0].mxu0
        %1554 = vmatprep.mubr.f32.mxu0 0.0
        %1555 = vmatmul.mubr.f32.gmra.mrb[0].mxu0 %v395
        %v1556 = vpop.f32.mrb[0].mxu0
        %v1557 = vadd.f32 0.0, %v1556
        %v1558 = vpop.f32.mrb[0].mxu0
        %1559 = vmatprep.mubr.f32.mxu0 0.0
        %1560 = vmatmul.mubr.f32.gmra.mrb[0].mxu0 %v398
        %v1561 = vpop.f32.mrb[0].mxu0
        %v1562 = vadd.f32 0.0, %v1561
        %v1563 = vpop.f32.mrb[0].mxu0
        %1564 = vmatprep.mubr.f32.mxu0 0.0
        %1565 = vmatmul.mubr.f32.gmra.mrb[0].mxu0 %v401
        %v1566 = vpop.f32.mrb[0].mxu0
        %v1567 = vadd.f32 0.0, %v1566
        %v1568 = vpop.f32.mrb[0].mxu0
        %1569 = vmatprep.mubr.f32.mxu0 0.0
        %1570 = vmatmul.mubr.f32.gmra.mrb[0].mxu0 %v404
        %v1571 = vpop.f32.mrb[0].mxu0
        %v1572 = vadd.f32 0.0, %v1571
        %v1573 = vpop.f32.mrb[0].mxu0
        %1574 = vdwg.mxu0
        %1575 = vst.msk [vmem:[#allocation2] sm:$0xff] %vm252, %v1537
        %1576 = vst.msk [vmem:[#allocation2 + $0x8] sm:$0xff] %vm252, %v1542
        %1577 = vst.msk [vmem:[#allocation2 + $0x10] sm:$0xff] %vm252, %v1547
        %1578 = vst.msk [vmem:[#allocation2 + $0x18] sm:$0xff] %vm252, %v1552
        %1579 = vst.msk [vmem:[#allocation2 + $0x20] sm:$0xff] %vm252, %v1557
        %1580 = vst.msk [vmem:[#allocation2 + $0x28] sm:$0xff] %vm252, %v1562
        %1581 = vst.msk [vmem:[#allocation2 + $0x30] sm:$0xff] %vm252, %v1567
        %1582 = vst.msk [vmem:[#allocation2 + $0x38] sm:$0xff] %vm252, %v1572
        %v1583 = vld [vmem:[#allocation2] sm:$0xff]
        %v1584 = vld [vmem:[#allocation2 + $0x8] sm:$0xff]
        %v1585 = vld [vmem:[#allocation2 + $0x10] sm:$0xff]
        %v1586 = vld [vmem:[#allocation2 + $0x18] sm:$0xff]
        %v1587 = vld [vmem:[#allocation2 + $0x20] sm:$0xff]
        %v1588 = vld [vmem:[#allocation2 + $0x28] sm:$0xff]
        %v1589 = vld [vmem:[#allocation2 + $0x30] sm:$0xff]
        %v1590 = vld [vmem:[#allocation2 + $0x38] sm:$0xff]
        %v1591 = vmul.f32 %v1583, %v220
        %v1592 = vmul.f32 %v1584, %v221
        %v1593 = vmul.f32 %v1585, %v222
        %v1594 = vmul.f32 %v1586, %v223
        %v1595 = vmul.f32 %v1587, %v224
        %v1596 = vmul.f32 %v1588, %v225
        %v1597 = vmul.f32 %v1589, %v226
        %v1598 = vmul.f32 %v1590, %v227
        %v1599 = vadd.f32 %v1591, %v228
        %v1600 = vadd.f32 %v1592, %v229
        %v1601 = vadd.f32 %v1593, %v230
        %v1602 = vadd.f32 %v1594, %v231
        %v1603 = vadd.f32 %v1595, %v232
        %v1604 = vadd.f32 %v1596, %v233
        %v1605 = vadd.f32 %v1597, %v234
        %v1606 = vadd.f32 %v1598, %v235
        %v1608 = vsel %vm252, %v1599, 0
        %v1611 = vsel %vm252, %v1600, 0
        %v1614 = vsel %vm252, %v1601, 0
        %v1617 = vsel %vm252, %v1602, 0
        %v1620 = vsel %vm252, %v1603, 0
        %v1623 = vsel %vm252, %v1604, 0
        %v1626 = vsel %vm252, %v1605, 0
        %v1629 = vsel %vm252, %v1606, 0
        %1631 = vmatprep.subr.mxu0 0.0
        %1632 = vmatpush1.msra.mxu0 %v244
        %1633 = vmatprep.subr.mxu0 0.0
        %1634 = vmatpush1.msra.mxu0 %v245
        %1635 = vmatprep.subr.mxu0 0.0
        %1636 = vmatpush1.msra.mxu0 %v246
        %1637 = vmatprep.subr.mxu0 0.0
        %1638 = vmatpush1.msra.mxu0 %v247
        %1639 = vmatprep.subr.mxu0 0.0
        %1640 = vmatpush1.msra.mxu0 %v248
        %1641 = vmatprep.subr.mxu0 0.0
        %1642 = vmatpush1.msra.mxu0 %v249
        %1643 = vmatprep.subr.mxu0 0.0
        %1644 = vmatpush1.msra.mxu0 %v250
        %1645 = vmatprep.subr.mxu0 0.0
        %1646 = vmatpush1.msra.mxu0 %v251
        %1647 = vmatprep.subr.mxu0 0.0
        %1648 = vmatpush1.msra.mxu0 0.0
        %1649 = vmatprep.subr.mxu0 0.0
        %1650 = vmatpush1.msra.mxu0 0.0
        %1651 = vmatprep.subr.mxu0 0.0
        %1652 = vmatpush1.msra.mxu0 0.0
        %1653 = vmatprep.subr.mxu0 0.0
        %1654 = vmatpush1.msra.mxu0 0.0
        %1655 = vmatprep.subr.mxu0 0.0
        %1656 = vmatpush1.msra.mxu0 0.0
        %1657 = vmatprep.subr.mxu0 0.0
        %1658 = vmatpush1.msra.mxu0 0.0
        %1659 = vmatprep.subr.mxu0 0.0
        %1660 = vmatpush1.msra.mxu0 0.0
        %1661 = vmatprep.subr.mxu0 0.0
        %1662 = vmatpush1.msra.mxu0 0.0
        %1663 = vmatprep.subr.mxu0 0.0
        %1664 = vmatpush1.msra.mxu0 0.0
        %1665 = vmatprep.subr.mxu0 0.0
        %1666 = vmatpush1.msra.mxu0 0.0
        %1667 = vmatprep.subr.mxu0 0.0
        %1668 = vmatpush1.msra.mxu0 0.0
        %1669 = vmatprep.subr.mxu0 0.0
        %1670 = vmatpush1.msra.mxu0 0.0
        %1671 = vmatprep.subr.mxu0 0.0
        %1672 = vmatpush1.msra.mxu0 0.0
        %1673 = vmatprep.subr.mxu0 0.0
        %1674 = vmatpush1.msra.mxu0 0.0
        %1675 = vmatprep.subr.mxu0 0.0
        %1676 = vmatpush1.msra.mxu0 0.0
        %1677 = vmatprep.subr.mxu0 0.0
        %1678 = vmatpush1.msra.mxu0 0.0
        %1679 = vmatprep.subr.mxu0 0.0
        %1680 = vmatpush1.msra.mxu0 0.0
        %1681 = vmatprep.subr.mxu0 0.0
        %1682 = vmatpush1.msra.mxu0 0.0
        %1683 = vmatprep.subr.mxu0 0.0
        %1684 = vmatpush1.msra.mxu0 0.0
        %1685 = vmatprep.subr.mxu0 0.0
        %1686 = vmatpush1.msra.mxu0 0.0
        %1687 = vmatprep.subr.mxu0 0.0
        %1688 = vmatpush1.msra.mxu0 0.0
        %1689 = vmatprep.subr.mxu0 0.0
        %1690 = vmatpush1.msra.mxu0 0.0
        %1691 = vmatprep.subr.mxu0 0.0
        %1692 = vmatpush1.msra.mxu0 0.0
        %1693 = vmatprep.subr.mxu0 0.0
        %1694 = vmatpush1.msra.mxu0 0.0
        %1695 = vmatprep.mubr.f32.mxu0 0.0
        %1696 = vmatmul.mubr.f32.gmra.mrb[0].mxu0 %v1608
        %v1697 = vpop.f32.mrb[0].mxu0
        %v1698 = vadd.f32 0.0, %v1697
        %v1699 = vpop.f32.mrb[0].mxu0
        %1700 = vmatprep.mubr.f32.mxu0 0.0
        %1701 = vmatmul.mubr.f32.gmra.mrb[0].mxu0 %v1611
        %v1702 = vpop.f32.mrb[0].mxu0
        %v1703 = vadd.f32 0.0, %v1702
        %v1704 = vpop.f32.mrb[0].mxu0
        %1705 = vmatprep.mubr.f32.mxu0 0.0
        %1706 = vmatmul.mubr.f32.gmra.mrb[0].mxu0 %v1614
        %v1707 = vpop.f32.mrb[0].mxu0
        %v1708 = vadd.f32 0.0, %v1707
        %v1709 = vpop.f32.mrb[0].mxu0
        %1710 = vmatprep.mubr.f32.mxu0 0.0
        %1711 = vmatmul.mubr.f32.gmra.mrb[0].mxu0 %v1617
        %v1712 = vpop.f32.mrb[0].mxu0
        %v1713 = vadd.f32 0.0, %v1712
        %v1714 = vpop.f32.mrb[0].mxu0
        %1715 = vmatprep.mubr.f32.mxu0 0.0
        %1716 = vmatmul.mubr.f32.gmra.mrb[0].mxu0 %v1620
        %v1717 = vpop.f32.mrb[0].mxu0
        %v1718 = vadd.f32 0.0, %v1717
        %v1719 = vpop.f32.mrb[0].mxu0
        %1720 = vmatprep.mubr.f32.mxu0 0.0
        %1721 = vmatmul.mubr.f32.gmra.mrb[0].mxu0 %v1623
        %v1722 = vpop.f32.mrb[0].mxu0
        %v1723 = vadd.f32 0.0, %v1722
        %v1724 = vpop.f32.mrb[0].mxu0
        %1725 = vmatprep.mubr.f32.mxu0 0.0
        %1726 = vmatmul.mubr.f32.gmra.mrb[0].mxu0 %v1626
        %v1727 = vpop.f32.mrb[0].mxu0
        %v1728 = vadd.f32 0.0, %v1727
        %v1729 = vpop.f32.mrb[0].mxu0
        %1730 = vmatprep.mubr.f32.mxu0 0.0
        %1731 = vmatmul.mubr.f32.gmra.mrb[0].mxu0 %v1629
        %v1732 = vpop.f32.mrb[0].mxu0
        %v1733 = vadd.f32 0.0, %v1732
        %v1734 = vpop.f32.mrb[0].mxu0
        %1735 = vdwg.mxu0
        %1736 = vmatprep.subr.mxu0 0.0
        %1737 = vmatpush1.msra.mxu0 %v1698
        %1738 = vmatprep.subr.mxu0 0.0
        %1739 = vmatpush1.msra.mxu0 %v1703
        %1740 = vmatprep.subr.mxu0 0.0
        %1741 = vmatpush1.msra.mxu0 %v1708
        %1742 = vmatprep.subr.mxu0 0.0
        %1743 = vmatpush1.msra.mxu0 %v1713
        %1744 = vmatprep.subr.mxu0 0.0
        %1745 = vmatpush1.msra.mxu0 %v1718
        %1746 = vmatprep.subr.mxu0 0.0
        %1747 = vmatpush1.msra.mxu0 %v1723
        %1748 = vmatprep.subr.mxu0 0.0
        %1749 = vmatpush1.msra.mxu0 %v1728
        %1750 = vmatprep.subr.mxu0 0.0
        %1751 = vmatpush1.msra.mxu0 %v1733
        %1752 = vmatprep.subr.mxu0 0.0
        %1753 = vmatpush1.msra.mxu0 0.0
        %1754 = vmatprep.subr.mxu0 0.0
        %1755 = vmatpush1.msra.mxu0 0.0
        %1756 = vmatprep.subr.mxu0 0.0
        %1757 = vmatpush1.msra.mxu0 0.0
        %1758 = vmatprep.subr.mxu0 0.0
        %1759 = vmatpush1.msra.mxu0 0.0
        %1760 = vmatprep.subr.mxu0 0.0
        %1761 = vmatpush1.msra.mxu0 0.0
        %1762 = vmatprep.subr.mxu0 0.0
        %1763 = vmatpush1.msra.mxu0 0.0
        %1764 = vmatprep.subr.mxu0 0.0
        %1765 = vmatpush1.msra.mxu0 0.0
        %1766 = vmatprep.subr.mxu0 0.0
        %1767 = vmatpush1.msra.mxu0 0.0
        %1768 = vmatprep.subr.mxu0 0.0
        %1769 = vmatpush1.msra.mxu0 0.0
        %1770 = vmatprep.subr.mxu0 0.0
        %1771 = vmatpush1.msra.mxu0 0.0
        %1772 = vmatprep.subr.mxu0 0.0
        %1773 = vmatpush1.msra.mxu0 0.0
        %1774 = vmatprep.subr.mxu0 0.0
        %1775 = vmatpush1.msra.mxu0 0.0
        %1776 = vmatprep.subr.mxu0 0.0
        %1777 = vmatpush1.msra.mxu0 0.0
        %1778 = vmatprep.subr.mxu0 0.0
        %1779 = vmatpush1.msra.mxu0 0.0
        %1780 = vmatprep.subr.mxu0 0.0
        %1781 = vmatpush1.msra.mxu0 0.0
        %1782 = vmatprep.subr.mxu0 0.0
        %1783 = vmatpush1.msra.mxu0 0.0
        %1784 = vmatprep.subr.mxu0 0.0
        %1785 = vmatpush1.msra.mxu0 0.0
        %1786 = vmatprep.subr.mxu0 0.0
        %1787 = vmatpush1.msra.mxu0 0.0
        %1788 = vmatprep.subr.mxu0 0.0
        %1789 = vmatpush1.msra.mxu0 0.0
        %1790 = vmatprep.subr.mxu0 0.0
        %1791 = vmatpush1.msra.mxu0 0.0
        %1792 = vmatprep.subr.mxu0 0.0
        %1793 = vmatpush1.msra.mxu0 0.0
        %1794 = vmatprep.subr.mxu0 0.0
        %1795 = vmatpush1.msra.mxu0 0.0
        %1796 = vmatprep.subr.mxu0 0.0
        %1797 = vmatpush1.msra.mxu0 0.0
        %1798 = vmatprep.subr.mxu0 0.0
        %1799 = vmatpush1.msra.mxu0 0.0
        %1800 = vmatprep.mubr.f32.mxu0 0.0
        %1801 = vmatmul.mubr.f32.gmra.mrb[0].mxu0 %v383
        %v1802 = vpop.f32.mrb[0].mxu0
        %v1803 = vadd.f32 0.0, %v1802
        %v1804 = vpop.f32.mrb[0].mxu0
        %1805 = vmatprep.mubr.f32.mxu0 0.0
        %1806 = vmatmul.mubr.f32.gmra.mrb[0].mxu0 %v386
        %v1807 = vpop.f32.mrb[0].mxu0
        %v1808 = vadd.f32 0.0, %v1807
        %v1809 = vpop.f32.mrb[0].mxu0
        %1810 = vmatprep.mubr.f32.mxu0 0.0
        %1811 = vmatmul.mubr.f32.gmra.mrb[0].mxu0 %v389
        %v1812 = vpop.f32.mrb[0].mxu0
        %v1813 = vadd.f32 0.0, %v1812
        %v1814 = vpop.f32.mrb[0].mxu0
        %1815 = vmatprep.mubr.f32.mxu0 0.0
        %1816 = vmatmul.mubr.f32.gmra.mrb[0].mxu0 %v392
        %v1817 = vpop.f32.mrb[0].mxu0
        %v1818 = vadd.f32 0.0, %v1817
        %v1819 = vpop.f32.mrb[0].mxu0
        %1820 = vmatprep.mubr.f32.mxu0 0.0
        %1821 = vmatmul.mubr.f32.gmra.mrb[0].mxu0 %v395
        %v1822 = vpop.f32.mrb[0].mxu0
        %v1823 = vadd.f32 0.0, %v1822
        %v1824 = vpop.f32.mrb[0].mxu0
        %1825 = vmatprep.mubr.f32.mxu0 0.0
        %1826 = vmatmul.mubr.f32.gmra.mrb[0].mxu0 %v398
        %v1827 = vpop.f32.mrb[0].mxu0
        %v1828 = vadd.f32 0.0, %v1827
        %v1829 = vpop.f32.mrb[0].mxu0
        %1830 = vmatprep.mubr.f32.mxu0 0.0
        %1831 = vmatmul.mubr.f32.gmra.mrb[0].mxu0 %v401
        %v1832 = vpop.f32.mrb[0].mxu0
        %v1833 = vadd.f32 0.0, %v1832
        %v1834 = vpop.f32.mrb[0].mxu0
        %1835 = vmatprep.mubr.f32.mxu0 0.0
        %1836 = vmatmul.mubr.f32.gmra.mrb[0].mxu0 %v404
        %v1837 = vpop.f32.mrb[0].mxu0
        %v1838 = vadd.f32 0.0, %v1837
        %v1839 = vpop.f32.mrb[0].mxu0
        %1840 = vdwg.mxu0
        %1841 = vst.msk [vmem:[#allocation2] sm:$0xff] %vm252, %v1803
        %1842 = vst.msk [vmem:[#allocation2 + $0x8] sm:$0xff] %vm252, %v1808
        %1843 = vst.msk [vmem:[#allocation2 + $0x10] sm:$0xff] %vm252, %v1813
        %1844 = vst.msk [vmem:[#allocation2 + $0x18] sm:$0xff] %vm252, %v1818
        %1845 = vst.msk [vmem:[#allocation2 + $0x20] sm:$0xff] %vm252, %v1823
        %1846 = vst.msk [vmem:[#allocation2 + $0x28] sm:$0xff] %vm252, %v1828
        %1847 = vst.msk [vmem:[#allocation2 + $0x30] sm:$0xff] %vm252, %v1833
        %1848 = vst.msk [vmem:[#allocation2 + $0x38] sm:$0xff] %vm252, %v1838
        %v1849 = vld [vmem:[#allocation2] sm:$0xff]
        %v1850 = vld [vmem:[#allocation2 + $0x8] sm:$0xff]
        %v1851 = vld [vmem:[#allocation2 + $0x10] sm:$0xff]
        %v1852 = vld [vmem:[#allocation2 + $0x18] sm:$0xff]
        %v1853 = vld [vmem:[#allocation2 + $0x20] sm:$0xff]
        %v1854 = vld [vmem:[#allocation2 + $0x28] sm:$0xff]
        %v1855 = vld [vmem:[#allocation2 + $0x30] sm:$0xff]
        %v1856 = vld [vmem:[#allocation2 + $0x38] sm:$0xff]
        %v1857 = vmul.f32 %v1849, %v220
        %v1858 = vmul.f32 %v1850, %v221
        %v1859 = vmul.f32 %v1851, %v222
        %v1860 = vmul.f32 %v1852, %v223
        %v1861 = vmul.f32 %v1853, %v224
        %v1862 = vmul.f32 %v1854, %v225
        %v1863 = vmul.f32 %v1855, %v226
        %v1864 = vmul.f32 %v1856, %v227
        %v1865 = vadd.f32 %v1857, %v228
        %v1866 = vadd.f32 %v1858, %v229
        %v1867 = vadd.f32 %v1859, %v230
        %v1868 = vadd.f32 %v1860, %v231
        %v1869 = vadd.f32 %v1861, %v232
        %v1870 = vadd.f32 %v1862, %v233
        %v1871 = vadd.f32 %v1863, %v234
        %v1872 = vadd.f32 %v1864, %v235
        %v1874 = vsel %vm252, %v1865, 0
        %v1877 = vsel %vm252, %v1866, 0
        %v1880 = vsel %vm252, %v1867, 0
        %v1883 = vsel %vm252, %v1868, 0
        %v1886 = vsel %vm252, %v1869, 0
        %v1889 = vsel %vm252, %v1870, 0
        %v1892 = vsel %vm252, %v1871, 0
        %v1895 = vsel %vm252, %v1872, 0
        %1897 = vmatprep.subr.mxu0 0.0
        %1898 = vmatpush1.msra.mxu0 %v244
        %1899 = vmatprep.subr.mxu0 0.0
        %1900 = vmatpush1.msra.mxu0 %v245
        %1901 = vmatprep.subr.mxu0 0.0
        %1902 = vmatpush1.msra.mxu0 %v246
        %1903 = vmatprep.subr.mxu0 0.0
        %1904 = vmatpush1.msra.mxu0 %v247
        %1905 = vmatprep.subr.mxu0 0.0
        %1906 = vmatpush1.msra.mxu0 %v248
        %1907 = vmatprep.subr.mxu0 0.0
        %1908 = vmatpush1.msra.mxu0 %v249
        %1909 = vmatprep.subr.mxu0 0.0
        %1910 = vmatpush1.msra.mxu0 %v250
        %1911 = vmatprep.subr.mxu0 0.0
        %1912 = vmatpush1.msra.mxu0 %v251
        %1913 = vmatprep.subr.mxu0 0.0
        %1914 = vmatpush1.msra.mxu0 0.0
        %1915 = vmatprep.subr.mxu0 0.0
        %1916 = vmatpush1.msra.mxu0 0.0
        %1917 = vmatprep.subr.mxu0 0.0
        %1918 = vmatpush1.msra.mxu0 0.0
        %1919 = vmatprep.subr.mxu0 0.0
        %1920 = vmatpush1.msra.mxu0 0.0
        %1921 = vmatprep.subr.mxu0 0.0
        %1922 = vmatpush1.msra.mxu0 0.0
        %1923 = vmatprep.subr.mxu0 0.0
        %1924 = vmatpush1.msra.mxu0 0.0
        %1925 = vmatprep.subr.mxu0 0.0
        %1926 = vmatpush1.msra.mxu0 0.0
        %1927 = vmatprep.subr.mxu0 0.0
        %1928 = vmatpush1.msra.mxu0 0.0
        %1929 = vmatprep.subr.mxu0 0.0
        %1930 = vmatpush1.msra.mxu0 0.0
        %1931 = vmatprep.subr.mxu0 0.0
        %1932 = vmatpush1.msra.mxu0 0.0
        %1933 = vmatprep.subr.mxu0 0.0
        %1934 = vmatpush1.msra.mxu0 0.0
        %1935 = vmatprep.subr.mxu0 0.0
        %1936 = vmatpush1.msra.mxu0 0.0
        %1937 = vmatprep.subr.mxu0 0.0
        %1938 = vmatpush1.msra.mxu0 0.0
        %1939 = vmatprep.subr.mxu0 0.0
        %1940 = vmatpush1.msra.mxu0 0.0
        %1941 = vmatprep.subr.mxu0 0.0
        %1942 = vmatpush1.msra.mxu0 0.0
        %1943 = vmatprep.subr.mxu0 0.0
        %1944 = vmatpush1.msra.mxu0 0.0
        %1945 = vmatprep.subr.mxu0 0.0
        %1946 = vmatpush1.msra.mxu0 0.0
        %1947 = vmatprep.subr.mxu0 0.0
        %1948 = vmatpush1.msra.mxu0 0.0
        %1949 = vmatprep.subr.mxu0 0.0
        %1950 = vmatpush1.msra.mxu0 0.0
        %1951 = vmatprep.subr.mxu0 0.0
        %1952 = vmatpush1.msra.mxu0 0.0
        %1953 = vmatprep.subr.mxu0 0.0
        %1954 = vmatpush1.msra.mxu0 0.0
        %1955 = vmatprep.subr.mxu0 0.0
        %1956 = vmatpush1.msra.mxu0 0.0
        %1957 = vmatprep.subr.mxu0 0.0
        %1958 = vmatpush1.msra.mxu0 0.0
        %1959 = vmatprep.subr.mxu0 0.0
        %1960 = vmatpush1.msra.mxu0 0.0
        %1961 = vmatprep.mubr.f32.mxu0 0.0
        %1962 = vmatmul.mubr.f32.gmra.mrb[0].mxu0 %v1874
        %v1963 = vpop.f32.mrb[0].mxu0
        %v1964 = vadd.f32 0.0, %v1963
        %v1965 = vpop.f32.mrb[0].mxu0
        %1966 = vmatprep.mubr.f32.mxu0 0.0
        %1967 = vmatmul.mubr.f32.gmra.mrb[0].mxu0 %v1877
        %v1968 = vpop.f32.mrb[0].mxu0
        %v1969 = vadd.f32 0.0, %v1968
        %v1970 = vpop.f32.mrb[0].mxu0
        %1971 = vmatprep.mubr.f32.mxu0 0.0
        %1972 = vmatmul.mubr.f32.gmra.mrb[0].mxu0 %v1880
        %v1973 = vpop.f32.mrb[0].mxu0
        %v1974 = vadd.f32 0.0, %v1973
        %v1975 = vpop.f32.mrb[0].mxu0
        %1976 = vmatprep.mubr.f32.mxu0 0.0
        %1977 = vmatmul.mubr.f32.gmra.mrb[0].mxu0 %v1883
        %v1978 = vpop.f32.mrb[0].mxu0
        %v1979 = vadd.f32 0.0, %v1978
        %v1980 = vpop.f32.mrb[0].mxu0
        %1981 = vmatprep.mubr.f32.mxu0 0.0
        %1982 = vmatmul.mubr.f32.gmra.mrb[0].mxu0 %v1886
        %v1983 = vpop.f32.mrb[0].mxu0
        %v1984 = vadd.f32 0.0, %v1983
        %v1985 = vpop.f32.mrb[0].mxu0
        %1986 = vmatprep.mubr.f32.mxu0 0.0
        %1987 = vmatmul.mubr.f32.gmra.mrb[0].mxu0 %v1889
        %v1988 = vpop.f32.mrb[0].mxu0
        %v1989 = vadd.f32 0.0, %v1988
        %v1990 = vpop.f32.mrb[0].mxu0
        %1991 = vmatprep.mubr.f32.mxu0 0.0
        %1992 = vmatmul.mubr.f32.gmra.mrb[0].mxu0 %v1892
        %v1993 = vpop.f32.mrb[0].mxu0
        %v1994 = vadd.f32 0.0, %v1993
        %v1995 = vpop.f32.mrb[0].mxu0
        %1996 = vmatprep.mubr.f32.mxu0 0.0
        %1997 = vmatmul.mubr.f32.gmra.mrb[0].mxu0 %v1895
        %v1998 = vpop.f32.mrb[0].mxu0
        %v1999 = vadd.f32 0.0, %v1998
        %v2000 = vpop.f32.mrb[0].mxu0
        %2001 = vdwg.mxu0
        %2002 = vmatprep.subr.mxu0 0.0
        %2003 = vmatpush1.msra.mxu0 %v1964
        %2004 = vmatprep.subr.mxu0 0.0
        %2005 = vmatpush1.msra.mxu0 %v1969
        %2006 = vmatprep.subr.mxu0 0.0
        %2007 = vmatpush1.msra.mxu0 %v1974
        %2008 = vmatprep.subr.mxu0 0.0
        %2009 = vmatpush1.msra.mxu0 %v1979
        %2010 = vmatprep.subr.mxu0 0.0
        %2011 = vmatpush1.msra.mxu0 %v1984
        %2012 = vmatprep.subr.mxu0 0.0
        %2013 = vmatpush1.msra.mxu0 %v1989
        %2014 = vmatprep.subr.mxu0 0.0
        %2015 = vmatpush1.msra.mxu0 %v1994
        %2016 = vmatprep.subr.mxu0 0.0
        %2017 = vmatpush1.msra.mxu0 %v1999
        %2018 = vmatprep.subr.mxu0 0.0
        %2019 = vmatpush1.msra.mxu0 0.0
        %2020 = vmatprep.subr.mxu0 0.0
        %2021 = vmatpush1.msra.mxu0 0.0
        %2022 = vmatprep.subr.mxu0 0.0
        %2023 = vmatpush1.msra.mxu0 0.0
        %2024 = vmatprep.subr.mxu0 0.0
        %2025 = vmatpush1.msra.mxu0 0.0
        %2026 = vmatprep.subr.mxu0 0.0
        %2027 = vmatpush1.msra.mxu0 0.0
        %2028 = vmatprep.subr.mxu0 0.0
        %2029 = vmatpush1.msra.mxu0 0.0
        %2030 = vmatprep.subr.mxu0 0.0
        %2031 = vmatpush1.msra.mxu0 0.0
        %2032 = vmatprep.subr.mxu0 0.0
        %2033 = vmatpush1.msra.mxu0 0.0
        %2034 = vmatprep.subr.mxu0 0.0
        %2035 = vmatpush1.msra.mxu0 0.0
        %2036 = vmatprep.subr.mxu0 0.0
        %2037 = vmatpush1.msra.mxu0 0.0
        %2038 = vmatprep.subr.mxu0 0.0
        %2039 = vmatpush1.msra.mxu0 0.0
        %2040 = vmatprep.subr.mxu0 0.0
        %2041 = vmatpush1.msra.mxu0 0.0
        %2042 = vmatprep.subr.mxu0 0.0
        %2043 = vmatpush1.msra.mxu0 0.0
        %2044 = vmatprep.subr.mxu0 0.0
        %2045 = vmatpush1.msra.mxu0 0.0
        %2046 = vmatprep.subr.mxu0 0.0
        %2047 = vmatpush1.msra.mxu0 0.0
        %2048 = vmatprep.subr.mxu0 0.0
        %2049 = vmatpush1.msra.mxu0 0.0
        %2050 = vmatprep.subr.mxu0 0.0
        %2051 = vmatpush1.msra.mxu0 0.0
        %2052 = vmatprep.subr.mxu0 0.0
        %2053 = vmatpush1.msra.mxu0 0.0
        %2054 = vmatprep.subr.mxu0 0.0
        %2055 = vmatpush1.msra.mxu0 0.0
        %2056 = vmatprep.subr.mxu0 0.0
        %2057 = vmatpush1.msra.mxu0 0.0
        %2058 = vmatprep.subr.mxu0 0.0
        %2059 = vmatpush1.msra.mxu0 0.0
        %2060 = vmatprep.subr.mxu0 0.0
        %2061 = vmatpush1.msra.mxu0 0.0
        %2062 = vmatprep.subr.mxu0 0.0
        %2063 = vmatpush1.msra.mxu0 0.0
        %2064 = vmatprep.subr.mxu0 0.0
        %2065 = vmatpush1.msra.mxu0 0.0
        %2066 = vmatprep.mubr.f32.mxu0 0.0
        %2067 = vmatmul.mubr.f32.gmra.mrb[0].mxu0 %v383
        %v2068 = vpop.f32.mrb[0].mxu0
        %v2069 = vadd.f32 0.0, %v2068
        %v2070 = vpop.f32.mrb[0].mxu0
        %2071 = vmatprep.mubr.f32.mxu0 0.0
        %2072 = vmatmul.mubr.f32.gmra.mrb[0].mxu0 %v386
        %v2073 = vpop.f32.mrb[0].mxu0
        %v2074 = vadd.f32 0.0, %v2073
        %v2075 = vpop.f32.mrb[0].mxu0
        %2076 = vmatprep.mubr.f32.mxu0 0.0
        %2077 = vmatmul.mubr.f32.gmra.mrb[0].mxu0 %v389
        %v2078 = vpop.f32.mrb[0].mxu0
        %v2079 = vadd.f32 0.0, %v2078
        %v2080 = vpop.f32.mrb[0].mxu0
        %2081 = vmatprep.mubr.f32.mxu0 0.0
        %2082 = vmatmul.mubr.f32.gmra.mrb[0].mxu0 %v392
        %v2083 = vpop.f32.mrb[0].mxu0
        %v2084 = vadd.f32 0.0, %v2083
        %v2085 = vpop.f32.mrb[0].mxu0
        %2086 = vmatprep.mubr.f32.mxu0 0.0
        %2087 = vmatmul.mubr.f32.gmra.mrb[0].mxu0 %v395
        %v2088 = vpop.f32.mrb[0].mxu0
        %v2089 = vadd.f32 0.0, %v2088
        %v2090 = vpop.f32.mrb[0].mxu0
        %2091 = vmatprep.mubr.f32.mxu0 0.0
        %2092 = vmatmul.mubr.f32.gmra.mrb[0].mxu0 %v398
        %v2093 = vpop.f32.mrb[0].mxu0
        %v2094 = vadd.f32 0.0, %v2093
        %v2095 = vpop.f32.mrb[0].mxu0
        %2096 = vmatprep.mubr.f32.mxu0 0.0
        %2097 = vmatmul.mubr.f32.gmra.mrb[0].mxu0 %v401
        %v2098 = vpop.f32.mrb[0].mxu0
        %v2099 = vadd.f32 0.0, %v2098
        %v2100 = vpop.f32.mrb[0].mxu0
        %2101 = vmatprep.mubr.f32.mxu0 0.0
        %2102 = vmatmul.mubr.f32.gmra.mrb[0].mxu0 %v404
        %v2103 = vpop.f32.mrb[0].mxu0
        %v2104 = vadd.f32 0.0, %v2103
        %v2105 = vpop.f32.mrb[0].mxu0
        %2106 = vdwg.mxu0
        %2107 = vst.msk [vmem:[#allocation2] sm:$0xff] %vm252, %v2069
        %2108 = vst.msk [vmem:[#allocation2 + $0x8] sm:$0xff] %vm252, %v2074
        %2109 = vst.msk [vmem:[#allocation2 + $0x10] sm:$0xff] %vm252, %v2079
        %2110 = vst.msk [vmem:[#allocation2 + $0x18] sm:$0xff] %vm252, %v2084
        %2111 = vst.msk [vmem:[#allocation2 + $0x20] sm:$0xff] %vm252, %v2089
        %2112 = vst.msk [vmem:[#allocation2 + $0x28] sm:$0xff] %vm252, %v2094
        %2113 = vst.msk [vmem:[#allocation2 + $0x30] sm:$0xff] %vm252, %v2099
        %2114 = vst.msk [vmem:[#allocation2 + $0x38] sm:$0xff] %vm252, %v2104
        %v2115 = vld [vmem:[#allocation2] sm:$0xff]
        %v2116 = vld [vmem:[#allocation2 + $0x8] sm:$0xff]
        %v2117 = vld [vmem:[#allocation2 + $0x10] sm:$0xff]
        %v2118 = vld [vmem:[#allocation2 + $0x18] sm:$0xff]
        %v2119 = vld [vmem:[#allocation2 + $0x20] sm:$0xff]
        %v2120 = vld [vmem:[#allocation2 + $0x28] sm:$0xff]
        %v2121 = vld [vmem:[#allocation2 + $0x30] sm:$0xff]
        %v2122 = vld [vmem:[#allocation2 + $0x38] sm:$0xff]
        %v2123 = vmul.f32 %v2115, %v220
        %v2124 = vmul.f32 %v2116, %v221
        %v2125 = vmul.f32 %v2117, %v222
        %v2126 = vmul.f32 %v2118, %v223
        %v2127 = vmul.f32 %v2119, %v224
        %v2128 = vmul.f32 %v2120, %v225
        %v2129 = vmul.f32 %v2121, %v226
        %v2130 = vmul.f32 %v2122, %v227
        %2131 = vst.msk [vmem:[%s217] sm:$0xff] %vm252, %v2123
        %2132 = vst.msk [vmem:[%s217 + $0x8] sm:$0xff] %vm252, %v2124
        %2133 = vst.msk [vmem:[%s217 + $0x10] sm:$0xff] %vm252, %v2125
        %2134 = vst.msk [vmem:[%s217 + $0x18] sm:$0xff] %vm252, %v2126
        %2135 = vst.msk [vmem:[%s217 + $0x20] sm:$0xff] %vm252, %v2127
        %2136 = vst.msk [vmem:[%s217 + $0x28] sm:$0xff] %vm252, %v2128
        %2137 = vst.msk [vmem:[%s217 + $0x30] sm:$0xff] %vm252, %v2129
        %2138 = vst.msk [vmem:[%s217 + $0x38] sm:$0xff] %vm252, %v2130
        %s2139 = sand.u32 %s97, 1
        %s2140 = scalar_lea.sflag [#allocation5], %s2139
        %s2141 = sand.u32 %s97, 1
        %s2142 = smul.addr %s2141, 64
        %s2143 = scalar_lea.vmem [#allocation9], %s2142
        // Predicated region
        $region45: #{confidence_driven_mask.1} parent=31 // pred_check
          %p2144 = pneg %p107
        $region46: #{confidence_driven_mask.1} parent=31 // pred_check_branch
          %2146 = sbr.rel (%p2144) target = $region48
        $region47: #{confidence_driven_mask.1} parent=31 // pred_region
          %s2147 = smul.u32 8, %s21
          %s2149 = ssub.s32 1024, 1024
          %2150 = vsyncadd %s2140, %s2149
          %s2151 = smul.addr %s2147, 128
          %s2152 = scalar_lea.hbm %s3, %s2151
          %s2153 = sshll.u32 %s2143, 4
          %s2154 = int_to_ptr.vmem [resolvable:$true] %s2153
          %2159 = dma.vmem_to_hbm [thread:$0]  %s2154, 1024, %s2152, %s2140, 128, 128, 8
        $region48: #{confidence_driven_mask.1} parent=31 // pred_fallthru
          _
      $region32: #{confidence_driven_mask.1} parent=5 // pred_fallthru
        _
      %p2160 = scmp.le.s32.totalorder 2, %s16
      // Predicated region
      $region49: #{confidence_driven_mask.1} parent=5 // pred_check
        %p2161 = pneg %p2160
      $region50: #{confidence_driven_mask.1} parent=5 // pred_check_branch
        %2163 = sbr.rel (%p2161) target = $region52
      $region51: #{confidence_driven_mask.1} parent=5 // pred_region
        %s2164 = ssub.s32 %s16, 2
        // Predicated region
        $region53: #{confidence_driven_mask.1} parent=51 // pred_check
          %p2165 = pneg %p113
        $region54: #{confidence_driven_mask.1} parent=51 // pred_check_branch
          %2167 = sbr.rel (%p2165) target = $region56
        $region55: #{confidence_driven_mask.1} parent=51 // pred_region
          %s2168 = sand.u32 %s98, 1
          %s2169 = scalar_lea.sflag [#allocation5], %s2168
          %s2170 = sand.u32 %s98, 1
          %s2171 = smul.addr %s2170, 64
          %s2172 = scalar_lea.vmem [#allocation9], %s2171
          %2173 = dma.done %s2169, 1024
        $region56: #{confidence_driven_mask.1} parent=51 // pred_fallthru
          _
      $region52: #{confidence_driven_mask.1} parent=5 // pred_fallthru
        _
    $region6: #{confidence_driven_mask.1} parent=1 // loop_footer
      %s20 = sadd.s32 1, %s16
    $region7: #{confidence_driven_mask.1} parent=1 // loop_footer_branch
      %15 = sbr.rel target = $region3
    $region8: #{confidence_driven_mask.1} parent=1 // loop_exit
      _
    %2174 = vsyncpa [#allocation4], 1
    %s2175 = scalar_lea.sflag [#allocation4], 1
    %2176 = vsyncpa %s2175, 1
    %2177 = vsyncpa [#allocation7], 1
    %2178 = vsyncpa [#allocation5], 1
    %s2179 = scalar_lea.sflag [#allocation5], 1
    %2180 = vsyncpa %s2179, 1

</llo_original>
